<compile_context>
chip_gen: v6e
topology: v6e:2x2x1
jax: 0.10.0
libtpu: 0.0.40
codegen_flags: <defaults>
</compile_context>

<pallas_src>
import functools

import jax
import jax.numpy as jnp
import numpy as np
from jax.experimental import pallas as pl
from jax.experimental.pallas import tpu as pltpu


def _round_up(x, m):
    return ((x + m - 1) // m) * m


def fm_fused_kernel(idx_ref, table_ref, bias_ref, out_ref, *, num_fields, embed_dim):
    # idx_ref:   (TB, F)          int32 post-offset indices (batch on sublanes)
    # table_ref: (total_p, D+1)   f32: [:, :D] embedding rows, [:, D] linear weight
    # bias_ref:  (1,)             f32 in SMEM
    # out_ref:   (TB, 1)          f32 sigmoid output
    TB = idx_ref.shape[0]
    total_p, d_ext = table_ref.shape  # d_ext == D + 1

    idx = idx_ref[...]                 # (TB, F) int32
    tbl = table_ref[...]               # (total_p, D+1) f32, resident in VMEM
    bias = bias_ref[0]                 # scalar f32

    # Multi-hot count matrix: counts[b, t] = #fields with idx[b, f] == t.
    # Single traversal over the (few) fields; VPU compares + adds.
    row_iota = jax.lax.broadcasted_iota(jnp.int32, (TB, total_p), 1)
    counts = jnp.zeros((TB, total_p), jnp.float32)
    for f in range(num_fields):
        counts = counts + (idx[:, f:f + 1] == row_iota).astype(jnp.float32)

    # Fused gather on the MXU:
    #   s   = sum_f table[idx_f]      = counts @ table
    #   ssq = sum_f table[idx_f]^2    = counts @ (table * table)
    s = jnp.dot(counts, tbl, preferred_element_type=jnp.float32,
                precision=jax.lax.Precision.HIGHEST)            # (TB, D+1)
    ssq = jnp.dot(counts, tbl * tbl, preferred_element_type=jnp.float32,
                  precision=jax.lax.Precision.HIGHEST)          # (TB, D+1)

    # Column D holds the linear weights; columns [0, D) hold the embedding.
    d_iota = jax.lax.broadcasted_iota(jnp.int32, (1, d_ext), 1)
    emb_mask = (d_iota < embed_dim).astype(jnp.float32)
    lin_mask = (d_iota == embed_dim).astype(jnp.float32)

    # FM identity per embedding dim + linear term, one cross-lane reduce.
    contrib = 0.5 * (s * s - ssq) * emb_mask + s * lin_mask     # (TB, D+1)
    logit = jnp.sum(contrib, axis=1, keepdims=True) + bias      # (TB, 1)
    out_ref[...] = jax.nn.sigmoid(logit)                        # EUP


def fm_forward(idx, table_ext, bias, *, embed_dim, block_b=2048):
    """idx: (B, F) int32 post-offset indices; table_ext: (total_p, D+1) f32;
    bias: (1,) f32  ->  (B,) f32 probabilities."""
    B, F = idx.shape
    total_p, d_ext = table_ext.shape

    # Batch tile: multiple of 128; keep >= 4 grid tiles when the batch is
    # large enough so v7x's two TensorCores both get work.
    b_pad128 = _round_up(B, 128)
    tb_cap = max(128, (b_pad128 // 4 // 128) * 128)
    tb = int(min(block_b, b_pad128, tb_cap))
    Bp = _round_up(B, tb)
    num_tiles = Bp // tb

    # Pad the (tiny) index tensor, not a gathered slab; 0 is a valid row.
    if Bp != B:
        idx = jnp.pad(idx, ((0, Bp - B), (0, 0)))

    flops = 2 * 2 * Bp * total_p * d_ext + Bp * total_p * F + 6 * Bp * d_ext
    bytes_accessed = Bp * F * 4 + 2 * total_p * d_ext * 4 + Bp * 4

    kernel = functools.partial(fm_fused_kernel, num_fields=F, embed_dim=embed_dim)

    out = pl.pallas_call(
        kernel,
        out_shape=jax.ShapeDtypeStruct((Bp, 1), jnp.float32),
        grid=(num_tiles,),
        in_specs=[
            pl.BlockSpec((tb, F), lambda i: (i, 0)),             # indices, per tile
            pl.BlockSpec((total_p, d_ext), lambda i: (0, 0)),    # whole table, VMEM-resident
            pl.BlockSpec(memory_space=pltpu.MemorySpace.SMEM),   # bias scalar
        ],
        out_specs=pl.BlockSpec((tb, 1), lambda i: (i, 0)),
        compiler_params=pltpu.CompilerParams(
            dimension_semantics=("parallel",),
            vmem_limit_bytes=32 * 1024 * 1024,
        ),
        cost_estimate=pl.CostEstimate(
            flops=flops, transcendentals=Bp, bytes_accessed=bytes_accessed),
    )(idx, table_ext, bias)

    return out[:B, 0]


class FactorizationMachineModelPallas:
    def __init__(self, field_dims, embed_dim, key):
        self.field_dims = tuple(int(f) for f in field_dims)
        self.embed_dim = int(embed_dim)
        total = sum(self.field_dims)
        # offsets = cumsum of field_dims shifted right (as in torchfm)
        self.offsets = jnp.asarray(
            np.array((0,) + tuple(np.cumsum(self.field_dims)[:-1]), dtype=np.int32)
        )
        k1, k2 = jax.random.split(key)
        # Deterministic synthetic parameters (xavier-ish uniform)
        self.embedding_table = jax.random.uniform(
            k1, (total, self.embed_dim), dtype=jnp.float32, minval=-0.1, maxval=0.1
        )
        self.linear_table = jax.random.uniform(
            k2, (total, 1), dtype=jnp.float32, minval=-0.1, maxval=0.1
        )
        self.bias = jnp.zeros((1,), dtype=jnp.float32)

        # Fused parameter table for the kernel: [:, :D] embedding, [:, D] linear.
        total_p = _round_up(total, 8)
        tbl = jnp.concatenate([self.embedding_table, self.linear_table], axis=1)
        if total_p != total:
            tbl = jnp.pad(tbl, ((0, total_p - total), (0, 0)))
        self.table_ext = tbl                                      # (total_p, D+1)

    def __call__(self, x, block_b=2048):
        """x: int32 tensor of shape (batch, num_fields)."""
        idx = x + self.offsets[None, :]                           # (B, F) — only glue op
        return fm_forward(idx, self.table_ext, self.bias,
                          embed_dim=self.embed_dim, block_b=block_b)

    def reference(self, x):
        """Pure-JAX reference matching the PyTorch forward."""
        idx = x + self.offsets[None, :]
        emb = jnp.take(self.embedding_table, idx, axis=0)
        lin_w = jnp.take(self.linear_table, idx, axis=0)[..., 0]
        linear = jnp.sum(lin_w, axis=1, keepdims=True) + self.bias[0]
        sos = jnp.sum(emb, axis=1) ** 2
        ssq = jnp.sum(emb ** 2, axis=1)
        ix = 0.5 * jnp.sum(sos - ssq, axis=1, keepdims=True)
        return jax.nn.sigmoid(linear + ix)[:, 0]


if __name__ == "__main__":
    key = jax.random.PRNGKey(0)
    field_dims = (3, 4, 5, 6)   # num_fields = 4
    embed_dim = 16
    batch = 8

    model = FactorizationMachineModelPallas(field_dims, embed_dim, key)

    # Deterministic integer feature indices, each within its field's range.
    kx = jax.random.PRNGKey(0)
    cols = []
    for fd in field_dims:
        kx, sub = jax.random.split(kx)
        cols.append(jax.random.randint(sub, (batch,), 0, fd, dtype=jnp.int32))
    x = jnp.stack(cols, axis=1)   # (batch, num_fields) int32

    out = model(x)
    jax.block_until_ready(out)
    ref = model.reference(x)
    np.testing.assert_allclose(np.asarray(out), np.asarray(ref), rtol=1e-5, atol=1e-6)

    # Second check: non-multiple-of-128 batch + multi-tile grid (padding path).
    batch2 = 300
    cols2 = []
    for fd in field_dims:
        kx, sub = jax.random.split(kx)
        cols2.append(jax.random.randint(sub, (batch2,), 0, fd, dtype=jnp.int32))
    x2 = jnp.stack(cols2, axis=1)
    out2 = model(x2, block_b=128)
    jax.block_until_ready(out2)
    ref2 = model.reference(x2)
    np.testing.assert_allclose(np.asarray(out2), np.asarray(ref2), rtol=1e-5, atol=1e-6)

    print("KERNEL_OK")
</pallas_src>

<mosaic_0001>
module attributes {stable_mosaic.version = 11 : i64} {
  func.func @fm_fused_kernel(%arg0: i32, %arg1: memref<128x4xi32, #tpu.memory_space<vmem>>, %arg2: memref<24x17xf32, #tpu.memory_space<vmem>>, %arg3: memref<1xf32, #tpu.memory_space<smem>>, %arg4: memref<128x1xf32, #tpu.memory_space<vmem>>) attributes {dimension_semantics = [#tpu.dimension_semantics<parallel>], iteration_bounds = array<i64: 1>, scalar_prefetch = 0 : i64, scratch_operands = 0 : i64, tpu.core_type = #tpu.core_type<tc>, window_params = [{transform_indices = @transform_0, window_bounds = array<i64: 128, 4>}, {pipeline_mode = #tpu.pipeline_mode<synchronous>, transform_indices = @transform_1, window_bounds = array<i64: 24, 17>}, {transform_indices = @transform_2, window_bounds = array<i64: 1>}, {transform_indices = @transform_3, window_bounds = array<i64: 128, 1>}]} {
    %c0 = arith.constant 0 : index
    %c0_0 = arith.constant 0 : index
    %0 = vector.load %arg1[%c0, %c0_0] : memref<128x4xi32, #tpu.memory_space<vmem>>, vector<128x4xi32>
    %c0_1 = arith.constant 0 : index
    %c0_2 = arith.constant 0 : index
    %1 = vector.load %arg2[%c0_1, %c0_2] : memref<24x17xf32, #tpu.memory_space<vmem>>, vector<24x17xf32>
    %c0_3 = arith.constant 0 : index
    %2 = memref.load %arg3[%c0_3] : memref<1xf32, #tpu.memory_space<smem>>
    %3 = tpu.iota {dimensions = array<i32: 1>} : vector<128x24xi32>
    %cst = arith.constant 0.000000e+00 : f32
    %4 = vector.broadcast %cst : f32 to vector<128x24xf32>
    %5 = vector.extract_strided_slice %0 {offsets = [0, 0], sizes = [128, 1], strides = [1, 1]} : vector<128x4xi32> to vector<128x1xi32>
    %6 = vector.broadcast %5 : vector<128x1xi32> to vector<128x24xi32>
    %7 = arith.cmpi eq, %6, %3 : vector<128x24xi32>
    %8 = arith.extui %7 : vector<128x24xi1> to vector<128x24xi32>
    %9 = arith.sitofp %8 : vector<128x24xi32> to vector<128x24xf32>
    %10 = arith.addf %4, %9 : vector<128x24xf32>
    %11 = vector.extract_strided_slice %0 {offsets = [0, 1], sizes = [128, 1], strides = [1, 1]} : vector<128x4xi32> to vector<128x1xi32>
    %12 = vector.broadcast %11 : vector<128x1xi32> to vector<128x24xi32>
    %13 = arith.cmpi eq, %12, %3 : vector<128x24xi32>
    %14 = arith.extui %13 : vector<128x24xi1> to vector<128x24xi32>
    %15 = arith.sitofp %14 : vector<128x24xi32> to vector<128x24xf32>
    %16 = arith.addf %10, %15 : vector<128x24xf32>
    %17 = vector.extract_strided_slice %0 {offsets = [0, 2], sizes = [128, 1], strides = [1, 1]} : vector<128x4xi32> to vector<128x1xi32>
    %18 = vector.broadcast %17 : vector<128x1xi32> to vector<128x24xi32>
    %19 = arith.cmpi eq, %18, %3 : vector<128x24xi32>
    %20 = arith.extui %19 : vector<128x24xi1> to vector<128x24xi32>
    %21 = arith.sitofp %20 : vector<128x24xi32> to vector<128x24xf32>
    %22 = arith.addf %16, %21 : vector<128x24xf32>
    %23 = vector.extract_strided_slice %0 {offsets = [0, 3], sizes = [128, 1], strides = [1, 1]} : vector<128x4xi32> to vector<128x1xi32>
    %24 = vector.broadcast %23 : vector<128x1xi32> to vector<128x24xi32>
    %25 = arith.cmpi eq, %24, %3 : vector<128x24xi32>
    %26 = arith.extui %25 : vector<128x24xi1> to vector<128x24xi32>
    %27 = arith.sitofp %26 : vector<128x24xi32> to vector<128x24xf32>
    %28 = arith.addf %22, %27 : vector<128x24xf32>
    %cst_4 = arith.constant dense<0.000000e+00> : vector<128x17xf32>
    %29 = tpu.matmul %28, %1, %cst_4 {dimension_numbers = #tpu.dot_dimension_numbers<[1], [0], [0], [1], [0, 0, 1, 1], [], []>, precision = #tpu.contract_precision<fp32>} : vector<128x24xf32>, vector<24x17xf32>, vector<128x17xf32> -> vector<128x17xf32>
    %30 = arith.mulf %1, %1 : vector<24x17xf32>
    %cst_5 = arith.constant dense<0.000000e+00> : vector<128x17xf32>
    %31 = tpu.matmul %28, %30, %cst_5 {dimension_numbers = #tpu.dot_dimension_numbers<[1], [0], [0], [1], [0, 0, 1, 1], [], []>, precision = #tpu.contract_precision<fp32>} : vector<128x24xf32>, vector<24x17xf32>, vector<128x17xf32> -> vector<128x17xf32>
    %32 = tpu.iota {dimensions = array<i32: 1>} : vector<1x17xi32>
    %c16_i32 = arith.constant 16 : i32
    %33 = vector.broadcast %c16_i32 : i32 to vector<1x17xi32>
    %34 = arith.cmpi slt, %32, %33 : vector<1x17xi32>
    %35 = arith.extui %34 : vector<1x17xi1> to vector<1x17xi32>
    %36 = arith.sitofp %35 : vector<1x17xi32> to vector<1x17xf32>
    %c16_i32_6 = arith.constant 16 : i32
    %37 = vector.broadcast %c16_i32_6 : i32 to vector<1x17xi32>
    %38 = arith.cmpi eq, %32, %37 : vector<1x17xi32>
    %39 = arith.extui %38 : vector<1x17xi1> to vector<1x17xi32>
    %40 = arith.sitofp %39 : vector<1x17xi32> to vector<1x17xf32>
    %41 = arith.mulf %29, %29 : vector<128x17xf32>
    %42 = arith.subf %41, %31 : vector<128x17xf32>
    %cst_7 = arith.constant 5.000000e-01 : f32
    %43 = vector.broadcast %cst_7 : f32 to vector<128x17xf32>
    %44 = arith.mulf %43, %42 : vector<128x17xf32>
    %45 = vector.broadcast %36 : vector<1x17xf32> to vector<128x17xf32>
    %46 = arith.mulf %44, %45 : vector<128x17xf32>
    %47 = vector.broadcast %40 : vector<1x17xf32> to vector<128x17xf32>
    %48 = arith.mulf %29, %47 : vector<128x17xf32>
    %49 = arith.addf %46, %48 : vector<128x17xf32>
    %cst_8 = arith.constant dense<0.000000e+00> : vector<128xf32>
    %50 = vector.multi_reduction <add>, %49, %cst_8 [1] : vector<128x17xf32> to vector<128xf32>
    %51 = vector.shape_cast %50 : vector<128xf32> to vector<128x1xf32>
    %52 = vector.broadcast %2 : f32 to vector<128x1xf32>
    %53 = arith.addf %51, %52 : vector<128x1xf32>
    %54 = arith.negf %53 : vector<128x1xf32>
    %55 = math.exp %54 : vector<128x1xf32>
    %cst_9 = arith.constant 1.000000e+00 : f32
    %56 = vector.broadcast %cst_9 : f32 to vector<128x1xf32>
    %57 = arith.addf %56, %55 : vector<128x1xf32>
    %58 = arith.divf %56, %57 : vector<128x1xf32>
    %c0_10 = arith.constant 0 : index
    %c0_11 = arith.constant 0 : index
    %59 = vector.load %arg4[%c0_10, %c0_11] : memref<128x1xf32, #tpu.memory_space<vmem>>, vector<128x1xf32>
    tpu.vector_store %arg4[%c0_10, %c0_11], %58 {strides = array<i32>} : memref<128x1xf32, #tpu.memory_space<vmem>>, vector<128x1xf32>,
    return
  }
  func.func @transform_0(%arg0: i32) -> (i32, i32) {
    %c0_i32 = arith.constant 0 : i32
    %c0_i32_0 = arith.constant 0 : i32
    return %arg0, %c0_i32 : i32, i32
  }
  func.func @transform_1(%arg0: i32) -> (i32, i32) {
    %c0_i32 = arith.constant 0 : i32
    %c0_i32_0 = arith.constant 0 : i32
    %c0_i32_1 = arith.constant 0 : i32
    return %c0_i32, %c0_i32_0 : i32, i32
  }
  func.func @transform_2(%arg0: i32) -> i32 {
    %c0_i32 = arith.constant 0 : i32
    %c0_i32_0 = arith.constant 0 : i32
    return %c0_i32 : i32
  }
  func.func @transform_3(%arg0: i32) -> (i32, i32) {
    %c0_i32 = arith.constant 0 : i32
    %c0_i32_0 = arith.constant 0 : i32
    return %arg0, %c0_i32 : i32, i32
  }
}

</mosaic_0001>

<llo_original>
// kernel: tpu_custom_call.1
$region0: #{tpu_custom_call.1}
  #allocation0 [shape = 'u32[]', space=smem, size = 0x4, offset = 0x4, fixed_abs, tag = 'smem constant byte address 0x4 - core index']
  #allocation1 [shape = 'u32[144,128]{1,0:T(1,128)}', space=vmem, size = 0x12000, scoped, tag = 'internal scratch']
  #allocation2 [shape = 'f32[1]{0:T(128)S(6)}', space=smem, size = 0x200, scoped, tag = 'scoped memory for tpu_custom_call.1']
  %s0 = inlined_call_operand.vmem [shape: s32[128,4], index: 0, kind: input, shape index: {}]
  %s1 = inlined_call_operand.vmem [shape: f32[24,17], index: 1, kind: input, shape index: {}]
  %s2 = inlined_call_operand.<no memory space> [shape: f32[1], index: 2, kind: input, shape index: {}]
  %s3 = inlined_call_operand.vmem [shape: f32[128,1], index: 3, kind: output, shape index: {}]
  %s4 = sld [smem:[#allocation0]]
  $region22: #{tpu_custom_call.1} parent=0
    _
  %s6 = ssub.s32 1, %s4
  %s7 = scalar_select 0, %s6, %s4
  %8 = sst [smem:[#allocation2]] %s2
  // Predicated region
  $region2: #{tpu_custom_call.1} parent=0 // pred_check
    _
  $region3: #{tpu_custom_call.1} parent=0 // pred_check_branch
    %10 = sbr.rel (0) target = $region5
  $region4: #{tpu_custom_call.1} parent=0 // pred_region
    _
  $region5: #{tpu_custom_call.1} parent=0 // pred_fallthru
    _
  // Predicated region
  $region6: #{tpu_custom_call.1} parent=0 // pred_check
    _
  $region7: #{tpu_custom_call.1} parent=0 // pred_check_branch
    %12 = sbr.rel (0) target = $region9
  $region8: #{tpu_custom_call.1} parent=0 // pred_region
    _
  $region9: #{tpu_custom_call.1} parent=0 // pred_fallthru
    _
  // Predicated region
  $region10: #{tpu_custom_call.1} parent=0 // pred_check
    _
  $region11: #{tpu_custom_call.1} parent=0 // pred_check_branch
    %14 = sbr.rel (0) target = $region13
  $region12: #{tpu_custom_call.1} parent=0 // pred_region
    _
  $region13: #{tpu_custom_call.1} parent=0 // pred_fallthru
    _
  %v15 = vld [vmem:[%s0] sm:$0xff]
  %v16 = vld [vmem:[%s0 + $0x8] sm:$0xff]
  %v17 = vld [vmem:[%s0 + $0x10] sm:$0xff]
  %v18 = vld [vmem:[%s0 + $0x18] sm:$0xff]
  %v19 = vld [vmem:[%s0 + $0x20] sm:$0xff]
  %v20 = vld [vmem:[%s0 + $0x28] sm:$0xff]
  %v21 = vld [vmem:[%s0 + $0x30] sm:$0xff]
  %v22 = vld [vmem:[%s0 + $0x38] sm:$0xff]
  %v23 = vld [vmem:[%s0 + $0x40] sm:$0xff]
  %v24 = vld [vmem:[%s0 + $0x48] sm:$0xff]
  %v25 = vld [vmem:[%s0 + $0x50] sm:$0xff]
  %v26 = vld [vmem:[%s0 + $0x58] sm:$0xff]
  %v27 = vld [vmem:[%s0 + $0x60] sm:$0xff]
  %v28 = vld [vmem:[%s0 + $0x68] sm:$0xff]
  %v29 = vld [vmem:[%s0 + $0x70] sm:$0xff]
  %v30 = vld [vmem:[%s0 + $0x78] sm:$0xff]
  %v31 = vld [vmem:[%s1] sm:$0xff]
  %v32 = vld [vmem:[%s1 + $0x8] sm:$0xff]
  %v33 = vld [vmem:[%s1 + $0x10] sm:$0xff]
  %s34 = sld [smem:[#allocation2]]
  %v35 = vlaneseq
  %v36 = vand.u32 %v35, 127
  %37 = vset.pattern.permute.xlu0 0
  %38 = vperm.xlu0 %37, %v15
  %v39 = vpop.permute.xlu0 %38
  %40 = vset.pattern.permute.xlu0 0
  %41 = vperm.xlu0 %40, %v16
  %v42 = vpop.permute.xlu0 %41
  %43 = vset.pattern.permute.xlu0 0
  %44 = vperm.xlu0 %43, %v17
  %v45 = vpop.permute.xlu0 %44
  %46 = vset.pattern.permute.xlu0 0
  %47 = vperm.xlu0 %46, %v18
  %v48 = vpop.permute.xlu0 %47
  %49 = vset.pattern.permute.xlu0 0
  %50 = vperm.xlu0 %49, %v19
  %v51 = vpop.permute.xlu0 %50
  %52 = vset.pattern.permute.xlu0 0
  %53 = vperm.xlu0 %52, %v20
  %v54 = vpop.permute.xlu0 %53
  %55 = vset.pattern.permute.xlu0 0
  %56 = vperm.xlu0 %55, %v21
  %v57 = vpop.permute.xlu0 %56
  %58 = vset.pattern.permute.xlu0 0
  %59 = vperm.xlu0 %58, %v22
  %v60 = vpop.permute.xlu0 %59
  %61 = vset.pattern.permute.xlu0 0
  %62 = vperm.xlu0 %61, %v23
  %v63 = vpop.permute.xlu0 %62
  %64 = vset.pattern.permute.xlu0 0
  %65 = vperm.xlu0 %64, %v24
  %v66 = vpop.permute.xlu0 %65
  %67 = vset.pattern.permute.xlu0 0
  %68 = vperm.xlu0 %67, %v25
  %v69 = vpop.permute.xlu0 %68
  %70 = vset.pattern.permute.xlu0 0
  %71 = vperm.xlu0 %70, %v26
  %v72 = vpop.permute.xlu0 %71
  %73 = vset.pattern.permute.xlu0 0
  %74 = vperm.xlu0 %73, %v27
  %v75 = vpop.permute.xlu0 %74
  %76 = vset.pattern.permute.xlu0 0
  %77 = vperm.xlu0 %76, %v28
  %v78 = vpop.permute.xlu0 %77
  %79 = vset.pattern.permute.xlu0 0
  %80 = vperm.xlu0 %79, %v29
  %v81 = vpop.permute.xlu0 %80
  %82 = vset.pattern.permute.xlu0 0
  %83 = vperm.xlu0 %82, %v30
  %v84 = vpop.permute.xlu0 %83
  %vm85 = vcmp.eq.s32.totalorder %v39, %v36
  %vm86 = vcmp.eq.s32.totalorder %v42, %v36
  %vm87 = vcmp.eq.s32.totalorder %v45, %v36
  %vm88 = vcmp.eq.s32.totalorder %v48, %v36
  %vm89 = vcmp.eq.s32.totalorder %v51, %v36
  %vm90 = vcmp.eq.s32.totalorder %v54, %v36
  %vm91 = vcmp.eq.s32.totalorder %v57, %v36
  %vm92 = vcmp.eq.s32.totalorder %v60, %v36
  %vm93 = vcmp.eq.s32.totalorder %v63, %v36
  %vm94 = vcmp.eq.s32.totalorder %v66, %v36
  %vm95 = vcmp.eq.s32.totalorder %v69, %v36
  %vm96 = vcmp.eq.s32.totalorder %v72, %v36
  %vm97 = vcmp.eq.s32.totalorder %v75, %v36
  %vm98 = vcmp.eq.s32.totalorder %v78, %v36
  %vm99 = vcmp.eq.s32.totalorder %v81, %v36
  %vm100 = vcmp.eq.s32.totalorder %v84, %v36
  %v101 = vsel %vm85, 1, 0
  %v102 = vsel %vm86, 1, 0
  %v103 = vsel %vm87, 1, 0
  %v104 = vsel %vm88, 1, 0
  %v105 = vsel %vm89, 1, 0
  %v106 = vsel %vm90, 1, 0
  %v107 = vsel %vm91, 1, 0
  %v108 = vsel %vm92, 1, 0
  %v109 = vsel %vm93, 1, 0
  %v110 = vsel %vm94, 1, 0
  %v111 = vsel %vm95, 1, 0
  %v112 = vsel %vm96, 1, 0
  %v113 = vsel %vm97, 1, 0
  %v114 = vsel %vm98, 1, 0
  %v115 = vsel %vm99, 1, 0
  %v116 = vsel %vm100, 1, 0
  %v117 = vcvt.s32.f32 %v101
  %v118 = vcvt.s32.f32 %v102
  %v119 = vcvt.s32.f32 %v103
  %v120 = vcvt.s32.f32 %v104
  %v121 = vcvt.s32.f32 %v105
  %v122 = vcvt.s32.f32 %v106
  %v123 = vcvt.s32.f32 %v107
  %v124 = vcvt.s32.f32 %v108
  %v125 = vcvt.s32.f32 %v109
  %v126 = vcvt.s32.f32 %v110
  %v127 = vcvt.s32.f32 %v111
  %v128 = vcvt.s32.f32 %v112
  %v129 = vcvt.s32.f32 %v113
  %v130 = vcvt.s32.f32 %v114
  %v131 = vcvt.s32.f32 %v115
  %v132 = vcvt.s32.f32 %v116
  %v133 = vadd.f32 %v117, 0.0
  %v134 = vadd.f32 %v118, 0.0
  %v135 = vadd.f32 %v119, 0.0
  %v136 = vadd.f32 %v120, 0.0
  %v137 = vadd.f32 %v121, 0.0
  %v138 = vadd.f32 %v122, 0.0
  %v139 = vadd.f32 %v123, 0.0
  %v140 = vadd.f32 %v124, 0.0
  %v141 = vadd.f32 %v125, 0.0
  %v142 = vadd.f32 %v126, 0.0
  %v143 = vadd.f32 %v127, 0.0
  %v144 = vadd.f32 %v128, 0.0
  %v145 = vadd.f32 %v129, 0.0
  %v146 = vadd.f32 %v130, 0.0
  %v147 = vadd.f32 %v131, 0.0
  %v148 = vadd.f32 %v132, 0.0
  %149 = vset.pattern.permute.xlu0 1
  %150 = vperm.xlu0 %149, %v15
  %v151 = vpop.permute.xlu0 %150
  %152 = vset.pattern.permute.xlu0 1
  %153 = vperm.xlu0 %152, %v16
  %v154 = vpop.permute.xlu0 %153
  %155 = vset.pattern.permute.xlu0 1
  %156 = vperm.xlu0 %155, %v17
  %v157 = vpop.permute.xlu0 %156
  %158 = vset.pattern.permute.xlu0 1
  %159 = vperm.xlu0 %158, %v18
  %v160 = vpop.permute.xlu0 %159
  %161 = vset.pattern.permute.xlu0 1
  %162 = vperm.xlu0 %161, %v19
  %v163 = vpop.permute.xlu0 %162
  %164 = vset.pattern.permute.xlu0 1
  %165 = vperm.xlu0 %164, %v20
  %v166 = vpop.permute.xlu0 %165
  %167 = vset.pattern.permute.xlu0 1
  %168 = vperm.xlu0 %167, %v21
  %v169 = vpop.permute.xlu0 %168
  %170 = vset.pattern.permute.xlu0 1
  %171 = vperm.xlu0 %170, %v22
  %v172 = vpop.permute.xlu0 %171
  %173 = vset.pattern.permute.xlu0 1
  %174 = vperm.xlu0 %173, %v23
  %v175 = vpop.permute.xlu0 %174
  %176 = vset.pattern.permute.xlu0 1
  %177 = vperm.xlu0 %176, %v24
  %v178 = vpop.permute.xlu0 %177
  %179 = vset.pattern.permute.xlu0 1
  %180 = vperm.xlu0 %179, %v25
  %v181 = vpop.permute.xlu0 %180
  %182 = vset.pattern.permute.xlu0 1
  %183 = vperm.xlu0 %182, %v26
  %v184 = vpop.permute.xlu0 %183
  %185 = vset.pattern.permute.xlu0 1
  %186 = vperm.xlu0 %185, %v27
  %v187 = vpop.permute.xlu0 %186
  %188 = vset.pattern.permute.xlu0 1
  %189 = vperm.xlu0 %188, %v28
  %v190 = vpop.permute.xlu0 %189
  %191 = vset.pattern.permute.xlu0 1
  %192 = vperm.xlu0 %191, %v29
  %v193 = vpop.permute.xlu0 %192
  %194 = vset.pattern.permute.xlu0 1
  %195 = vperm.xlu0 %194, %v30
  %v196 = vpop.permute.xlu0 %195
  %vm197 = vcmp.eq.s32.totalorder %v151, %v36
  %vm198 = vcmp.eq.s32.totalorder %v154, %v36
  %vm199 = vcmp.eq.s32.totalorder %v157, %v36
  %vm200 = vcmp.eq.s32.totalorder %v160, %v36
  %vm201 = vcmp.eq.s32.totalorder %v163, %v36
  %vm202 = vcmp.eq.s32.totalorder %v166, %v36
  %vm203 = vcmp.eq.s32.totalorder %v169, %v36
  %vm204 = vcmp.eq.s32.totalorder %v172, %v36
  %vm205 = vcmp.eq.s32.totalorder %v175, %v36
  %vm206 = vcmp.eq.s32.totalorder %v178, %v36
  %vm207 = vcmp.eq.s32.totalorder %v181, %v36
  %vm208 = vcmp.eq.s32.totalorder %v184, %v36
  %vm209 = vcmp.eq.s32.totalorder %v187, %v36
  %vm210 = vcmp.eq.s32.totalorder %v190, %v36
  %vm211 = vcmp.eq.s32.totalorder %v193, %v36
  %vm212 = vcmp.eq.s32.totalorder %v196, %v36
  %v213 = vsel %vm197, 1, 0
  %v214 = vsel %vm198, 1, 0
  %v215 = vsel %vm199, 1, 0
  %v216 = vsel %vm200, 1, 0
  %v217 = vsel %vm201, 1, 0
  %v218 = vsel %vm202, 1, 0
  %v219 = vsel %vm203, 1, 0
  %v220 = vsel %vm204, 1, 0
  %v221 = vsel %vm205, 1, 0
  %v222 = vsel %vm206, 1, 0
  %v223 = vsel %vm207, 1, 0
  %v224 = vsel %vm208, 1, 0
  %v225 = vsel %vm209, 1, 0
  %v226 = vsel %vm210, 1, 0
  %v227 = vsel %vm211, 1, 0
  %v228 = vsel %vm212, 1, 0
  %v229 = vcvt.s32.f32 %v213
  %v230 = vcvt.s32.f32 %v214
  %v231 = vcvt.s32.f32 %v215
  %v232 = vcvt.s32.f32 %v216
  %v233 = vcvt.s32.f32 %v217
  %v234 = vcvt.s32.f32 %v218
  %v235 = vcvt.s32.f32 %v219
  %v236 = vcvt.s32.f32 %v220
  %v237 = vcvt.s32.f32 %v221
  %v238 = vcvt.s32.f32 %v222
  %v239 = vcvt.s32.f32 %v223
  %v240 = vcvt.s32.f32 %v224
  %v241 = vcvt.s32.f32 %v225
  %v242 = vcvt.s32.f32 %v226
  %v243 = vcvt.s32.f32 %v227
  %v244 = vcvt.s32.f32 %v228
  %v245 = vadd.f32 %v133, %v229
  %v246 = vadd.f32 %v134, %v230
  %v247 = vadd.f32 %v135, %v231
  %v248 = vadd.f32 %v136, %v232
  %v249 = vadd.f32 %v137, %v233
  %v250 = vadd.f32 %v138, %v234
  %v251 = vadd.f32 %v139, %v235
  %v252 = vadd.f32 %v140, %v236
  %v253 = vadd.f32 %v141, %v237
  %v254 = vadd.f32 %v142, %v238
  %v255 = vadd.f32 %v143, %v239
  %v256 = vadd.f32 %v144, %v240
  %v257 = vadd.f32 %v145, %v241
  %v258 = vadd.f32 %v146, %v242
  %v259 = vadd.f32 %v147, %v243
  %v260 = vadd.f32 %v148, %v244
  %261 = vset.pattern.permute.xlu0 2
  %262 = vperm.xlu0 %261, %v15
  %v263 = vpop.permute.xlu0 %262
  %264 = vset.pattern.permute.xlu0 2
  %265 = vperm.xlu0 %264, %v16
  %v266 = vpop.permute.xlu0 %265
  %267 = vset.pattern.permute.xlu0 2
  %268 = vperm.xlu0 %267, %v17
  %v269 = vpop.permute.xlu0 %268
  %270 = vset.pattern.permute.xlu0 2
  %271 = vperm.xlu0 %270, %v18
  %v272 = vpop.permute.xlu0 %271
  %273 = vset.pattern.permute.xlu0 2
  %274 = vperm.xlu0 %273, %v19
  %v275 = vpop.permute.xlu0 %274
  %276 = vset.pattern.permute.xlu0 2
  %277 = vperm.xlu0 %276, %v20
  %v278 = vpop.permute.xlu0 %277
  %279 = vset.pattern.permute.xlu0 2
  %280 = vperm.xlu0 %279, %v21
  %v281 = vpop.permute.xlu0 %280
  %282 = vset.pattern.permute.xlu0 2
  %283 = vperm.xlu0 %282, %v22
  %v284 = vpop.permute.xlu0 %283
  %285 = vset.pattern.permute.xlu0 2
  %286 = vperm.xlu0 %285, %v23
  %v287 = vpop.permute.xlu0 %286
  %288 = vset.pattern.permute.xlu0 2
  %289 = vperm.xlu0 %288, %v24
  %v290 = vpop.permute.xlu0 %289
  %291 = vset.pattern.permute.xlu0 2
  %292 = vperm.xlu0 %291, %v25
  %v293 = vpop.permute.xlu0 %292
  %294 = vset.pattern.permute.xlu0 2
  %295 = vperm.xlu0 %294, %v26
  %v296 = vpop.permute.xlu0 %295
  %297 = vset.pattern.permute.xlu0 2
  %298 = vperm.xlu0 %297, %v27
  %v299 = vpop.permute.xlu0 %298
  %300 = vset.pattern.permute.xlu0 2
  %301 = vperm.xlu0 %300, %v28
  %v302 = vpop.permute.xlu0 %301
  %303 = vset.pattern.permute.xlu0 2
  %304 = vperm.xlu0 %303, %v29
  %v305 = vpop.permute.xlu0 %304
  %306 = vset.pattern.permute.xlu0 2
  %307 = vperm.xlu0 %306, %v30
  %v308 = vpop.permute.xlu0 %307
  %vm309 = vcmp.eq.s32.totalorder %v263, %v36
  %vm310 = vcmp.eq.s32.totalorder %v266, %v36
  %vm311 = vcmp.eq.s32.totalorder %v269, %v36
  %vm312 = vcmp.eq.s32.totalorder %v272, %v36
  %vm313 = vcmp.eq.s32.totalorder %v275, %v36
  %vm314 = vcmp.eq.s32.totalorder %v278, %v36
  %vm315 = vcmp.eq.s32.totalorder %v281, %v36
  %vm316 = vcmp.eq.s32.totalorder %v284, %v36
  %vm317 = vcmp.eq.s32.totalorder %v287, %v36
  %vm318 = vcmp.eq.s32.totalorder %v290, %v36
  %vm319 = vcmp.eq.s32.totalorder %v293, %v36
  %vm320 = vcmp.eq.s32.totalorder %v296, %v36
  %vm321 = vcmp.eq.s32.totalorder %v299, %v36
  %vm322 = vcmp.eq.s32.totalorder %v302, %v36
  %vm323 = vcmp.eq.s32.totalorder %v305, %v36
  %vm324 = vcmp.eq.s32.totalorder %v308, %v36
  %v325 = vsel %vm309, 1, 0
  %v326 = vsel %vm310, 1, 0
  %v327 = vsel %vm311, 1, 0
  %v328 = vsel %vm312, 1, 0
  %v329 = vsel %vm313, 1, 0
  %v330 = vsel %vm314, 1, 0
  %v331 = vsel %vm315, 1, 0
  %v332 = vsel %vm316, 1, 0
  %v333 = vsel %vm317, 1, 0
  %v334 = vsel %vm318, 1, 0
  %v335 = vsel %vm319, 1, 0
  %v336 = vsel %vm320, 1, 0
  %v337 = vsel %vm321, 1, 0
  %v338 = vsel %vm322, 1, 0
  %v339 = vsel %vm323, 1, 0
  %v340 = vsel %vm324, 1, 0
  %v341 = vcvt.s32.f32 %v325
  %v342 = vcvt.s32.f32 %v326
  %v343 = vcvt.s32.f32 %v327
  %v344 = vcvt.s32.f32 %v328
  %v345 = vcvt.s32.f32 %v329
  %v346 = vcvt.s32.f32 %v330
  %v347 = vcvt.s32.f32 %v331
  %v348 = vcvt.s32.f32 %v332
  %v349 = vcvt.s32.f32 %v333
  %v350 = vcvt.s32.f32 %v334
  %v351 = vcvt.s32.f32 %v335
  %v352 = vcvt.s32.f32 %v336
  %v353 = vcvt.s32.f32 %v337
  %v354 = vcvt.s32.f32 %v338
  %v355 = vcvt.s32.f32 %v339
  %v356 = vcvt.s32.f32 %v340
  %v357 = vadd.f32 %v245, %v341
  %v358 = vadd.f32 %v246, %v342
  %v359 = vadd.f32 %v247, %v343
  %v360 = vadd.f32 %v248, %v344
  %v361 = vadd.f32 %v249, %v345
  %v362 = vadd.f32 %v250, %v346
  %v363 = vadd.f32 %v251, %v347
  %v364 = vadd.f32 %v252, %v348
  %v365 = vadd.f32 %v253, %v349
  %v366 = vadd.f32 %v254, %v350
  %v367 = vadd.f32 %v255, %v351
  %v368 = vadd.f32 %v256, %v352
  %v369 = vadd.f32 %v257, %v353
  %v370 = vadd.f32 %v258, %v354
  %v371 = vadd.f32 %v259, %v355
  %v372 = vadd.f32 %v260, %v356
  %373 = vset.pattern.permute.xlu0 3
  %374 = vperm.xlu0 %373, %v15
  %v375 = vpop.permute.xlu0 %374
  %376 = vset.pattern.permute.xlu0 3
  %377 = vperm.xlu0 %376, %v16
  %v378 = vpop.permute.xlu0 %377
  %379 = vset.pattern.permute.xlu0 3
  %380 = vperm.xlu0 %379, %v17
  %v381 = vpop.permute.xlu0 %380
  %382 = vset.pattern.permute.xlu0 3
  %383 = vperm.xlu0 %382, %v18
  %v384 = vpop.permute.xlu0 %383
  %385 = vset.pattern.permute.xlu0 3
  %386 = vperm.xlu0 %385, %v19
  %v387 = vpop.permute.xlu0 %386
  %388 = vset.pattern.permute.xlu0 3
  %389 = vperm.xlu0 %388, %v20
  %v390 = vpop.permute.xlu0 %389
  %391 = vset.pattern.permute.xlu0 3
  %392 = vperm.xlu0 %391, %v21
  %v393 = vpop.permute.xlu0 %392
  %394 = vset.pattern.permute.xlu0 3
  %395 = vperm.xlu0 %394, %v22
  %v396 = vpop.permute.xlu0 %395
  %397 = vset.pattern.permute.xlu0 3
  %398 = vperm.xlu0 %397, %v23
  %v399 = vpop.permute.xlu0 %398
  %400 = vset.pattern.permute.xlu0 3
  %401 = vperm.xlu0 %400, %v24
  %v402 = vpop.permute.xlu0 %401
  %403 = vset.pattern.permute.xlu0 3
  %404 = vperm.xlu0 %403, %v25
  %v405 = vpop.permute.xlu0 %404
  %406 = vset.pattern.permute.xlu0 3
  %407 = vperm.xlu0 %406, %v26
  %v408 = vpop.permute.xlu0 %407
  %409 = vset.pattern.permute.xlu0 3
  %410 = vperm.xlu0 %409, %v27
  %v411 = vpop.permute.xlu0 %410
  %412 = vset.pattern.permute.xlu0 3
  %413 = vperm.xlu0 %412, %v28
  %v414 = vpop.permute.xlu0 %413
  %415 = vset.pattern.permute.xlu0 3
  %416 = vperm.xlu0 %415, %v29
  %v417 = vpop.permute.xlu0 %416
  %418 = vset.pattern.permute.xlu0 3
  %419 = vperm.xlu0 %418, %v30
  %v420 = vpop.permute.xlu0 %419
  %vm421 = vcmp.eq.s32.totalorder %v375, %v36
  %vm422 = vcmp.eq.s32.totalorder %v378, %v36
  %vm423 = vcmp.eq.s32.totalorder %v381, %v36
  %vm424 = vcmp.eq.s32.totalorder %v384, %v36
  %vm425 = vcmp.eq.s32.totalorder %v387, %v36
  %vm426 = vcmp.eq.s32.totalorder %v390, %v36
  %vm427 = vcmp.eq.s32.totalorder %v393, %v36
  %vm428 = vcmp.eq.s32.totalorder %v396, %v36
  %vm429 = vcmp.eq.s32.totalorder %v399, %v36
  %vm430 = vcmp.eq.s32.totalorder %v402, %v36
  %vm431 = vcmp.eq.s32.totalorder %v405, %v36
  %vm432 = vcmp.eq.s32.totalorder %v408, %v36
  %vm433 = vcmp.eq.s32.totalorder %v411, %v36
  %vm434 = vcmp.eq.s32.totalorder %v414, %v36
  %vm435 = vcmp.eq.s32.totalorder %v417, %v36
  %vm436 = vcmp.eq.s32.totalorder %v420, %v36
  %v437 = vsel %vm421, 1, 0
  %v438 = vsel %vm422, 1, 0
  %v439 = vsel %vm423, 1, 0
  %v440 = vsel %vm424, 1, 0
  %v441 = vsel %vm425, 1, 0
  %v442 = vsel %vm426, 1, 0
  %v443 = vsel %vm427, 1, 0
  %v444 = vsel %vm428, 1, 0
  %v445 = vsel %vm429, 1, 0
  %v446 = vsel %vm430, 1, 0
  %v447 = vsel %vm431, 1, 0
  %v448 = vsel %vm432, 1, 0
  %v449 = vsel %vm433, 1, 0
  %v450 = vsel %vm434, 1, 0
  %v451 = vsel %vm435, 1, 0
  %v452 = vsel %vm436, 1, 0
  %v453 = vcvt.s32.f32 %v437
  %v454 = vcvt.s32.f32 %v438
  %v455 = vcvt.s32.f32 %v439
  %v456 = vcvt.s32.f32 %v440
  %v457 = vcvt.s32.f32 %v441
  %v458 = vcvt.s32.f32 %v442
  %v459 = vcvt.s32.f32 %v443
  %v460 = vcvt.s32.f32 %v444
  %v461 = vcvt.s32.f32 %v445
  %v462 = vcvt.s32.f32 %v446
  %v463 = vcvt.s32.f32 %v447
  %v464 = vcvt.s32.f32 %v448
  %v465 = vcvt.s32.f32 %v449
  %v466 = vcvt.s32.f32 %v450
  %v467 = vcvt.s32.f32 %v451
  %v468 = vcvt.s32.f32 %v452
  %v469 = vadd.f32 %v357, %v453
  %v470 = vadd.f32 %v358, %v454
  %v471 = vadd.f32 %v359, %v455
  %v472 = vadd.f32 %v360, %v456
  %v473 = vadd.f32 %v361, %v457
  %v474 = vadd.f32 %v362, %v458
  %v475 = vadd.f32 %v363, %v459
  %v476 = vadd.f32 %v364, %v460
  %v477 = vadd.f32 %v365, %v461
  %v478 = vadd.f32 %v366, %v462
  %v479 = vadd.f32 %v367, %v463
  %v480 = vadd.f32 %v368, %v464
  %v481 = vadd.f32 %v369, %v465
  %v482 = vadd.f32 %v370, %v466
  %v483 = vadd.f32 %v371, %v467
  %v484 = vadd.f32 %v372, %v468
  %vm485 = vcmask 195584
  %v487 = vsel %vm485, %v469, 0
  %v490 = vsel %vm485, %v470, 0
  %v493 = vsel %vm485, %v471, 0
  %v496 = vsel %vm485, %v472, 0
  %v499 = vsel %vm485, %v473, 0
  %v502 = vsel %vm485, %v474, 0
  %v505 = vsel %vm485, %v475, 0
  %v508 = vsel %vm485, %v476, 0
  %v511 = vsel %vm485, %v477, 0
  %v514 = vsel %vm485, %v478, 0
  %v517 = vsel %vm485, %v479, 0
  %v520 = vsel %vm485, %v480, 0
  %v523 = vsel %vm485, %v481, 0
  %v526 = vsel %vm485, %v482, 0
  %v529 = vsel %vm485, %v483, 0
  %v532 = vsel %vm485, %v484, 0
  %534 = vmatprep.subr.mxu0 0.0
  %535 = vmatpush1.msra.mxu0 0.0
  %536 = vmatprep.subr.mxu0 0.0
  %537 = vmatpush1.msra.mxu0 0.0
  %538 = vmatprep.subr.mxu0 0.0
  %539 = vmatpush1.msra.mxu0 0.0
  %540 = vmatprep.subr.mxu0 0.0
  %541 = vmatpush1.msra.mxu0 0.0
  %542 = vmatprep.subr.mxu0 0.0
  %543 = vmatpush1.msra.mxu0 0.0
  %544 = vmatprep.subr.mxu0 0.0
  %545 = vmatpush1.msra.mxu0 0.0
  %546 = vmatprep.subr.mxu0 0.0
  %547 = vmatpush1.msra.mxu0 0.0
  %548 = vmatprep.subr.mxu0 0.0
  %549 = vmatpush1.msra.mxu0 0.0
  %550 = vmatprep.subr.mxu0 0.0
  %551 = vmatpush1.msra.mxu0 0.0
  %552 = vmatprep.subr.mxu0 0.0
  %553 = vmatpush1.msra.mxu0 0.0
  %554 = vmatprep.subr.mxu0 0.0
  %555 = vmatpush1.msra.mxu0 0.0
  %556 = vmatprep.subr.mxu0 0.0
  %557 = vmatpush1.msra.mxu0 0.0
  %558 = vmatprep.subr.mxu0 0.0
  %559 = vmatpush1.msra.mxu0 0.0
  %560 = vmatprep.subr.mxu0 0.0
  %v561 = vand.u32 %v33, 4294901760
  %562 = vmatpush1.msra.mxu0 %v561
  %563 = vmatprep.subr.mxu0 0.0
  %v564 = vand.u32 %v32, 4294901760
  %565 = vmatpush1.msra.mxu0 %v564
  %566 = vmatprep.subr.mxu0 0.0
  %v567 = vand.u32 %v31, 4294901760
  %568 = vmatpush1.msra.mxu0 %v567
  %569 = vmatprep.subr.mxu0 0.0
  %570 = vmatpush2.msra.mxu0 0.0
  %571 = vmatprep.subr.mxu0 0.0
  %572 = vmatpush2.msra.mxu0 0.0
  %573 = vmatprep.subr.mxu0 0.0
  %574 = vmatpush2.msra.mxu0 0.0
  %575 = vmatprep.subr.mxu0 0.0
  %576 = vmatpush2.msra.mxu0 0.0
  %577 = vmatprep.subr.mxu0 0.0
  %578 = vmatpush2.msra.mxu0 0.0
  %579 = vmatprep.subr.mxu0 0.0
  %580 = vmatpush2.msra.mxu0 0.0
  %581 = vmatprep.subr.mxu0 0.0
  %582 = vmatpush2.msra.mxu0 0.0
  %583 = vmatprep.subr.mxu0 0.0
  %584 = vmatpush2.msra.mxu0 0.0
  %585 = vmatprep.subr.mxu0 0.0
  %586 = vmatpush2.msra.mxu0 0.0
  %587 = vmatprep.subr.mxu0 0.0
  %588 = vmatpush2.msra.mxu0 0.0
  %589 = vmatprep.subr.mxu0 0.0
  %590 = vmatpush2.msra.mxu0 0.0
  %591 = vmatprep.subr.mxu0 0.0
  %592 = vmatpush2.msra.mxu0 0.0
  %593 = vmatprep.subr.mxu0 0.0
  %594 = vmatpush2.msra.mxu0 0.0
  %595 = vmatprep.subr.mxu0 0.0
  %596 = vmatpush2.msra.mxu0 0.0
  %597 = vmatprep.subr.mxu0 0.0
  %598 = vmatpush2.msra.mxu0 0.0
  %599 = vmatprep.subr.mxu0 0.0
  %600 = vmatpush2.msra.mxu0 0.0
  %601 = vmatprep.mubr.f32.mxu0 0.0
  %v602 = vand.u32 %v487, 4294901760
  %v603 = vsub.f32 %v487, %v602
  %v604 = vand.u32 %v603, 4294901760
  %v605 = vsub.f32 %v603, %v604
  %v606 = vand.u32 %v605, 4294901760
  %607 = vmatmul.mubr.f32.gmra.mxu0 %v606
  %v608 = vpop.f32.mrf.mxu0
  %v609 = vadd.f32 0.0, %v608
  %v610 = vpop.f32.mrf.mxu0
  %611 = vmatprep.mubr.f32.mxu0 0.0
  %v612 = vand.u32 %v490, 4294901760
  %v613 = vsub.f32 %v490, %v612
  %v614 = vand.u32 %v613, 4294901760
  %v615 = vsub.f32 %v613, %v614
  %v616 = vand.u32 %v615, 4294901760
  %617 = vmatmul.mubr.f32.gmra.mxu0 %v616
  %v618 = vpop.f32.mrf.mxu0
  %v619 = vadd.f32 0.0, %v618
  %v620 = vpop.f32.mrf.mxu0
  %621 = vmatprep.mubr.f32.mxu0 0.0
  %v622 = vand.u32 %v493, 4294901760
  %v623 = vsub.f32 %v493, %v622
  %v624 = vand.u32 %v623, 4294901760
  %v625 = vsub.f32 %v623, %v624
  %v626 = vand.u32 %v625, 4294901760
  %627 = vmatmul.mubr.f32.gmra.mxu0 %v626
  %v628 = vpop.f32.mrf.mxu0
  %v629 = vadd.f32 0.0, %v628
  %v630 = vpop.f32.mrf.mxu0
  %631 = vmatprep.mubr.f32.mxu0 0.0
  %v632 = vand.u32 %v496, 4294901760
  %v633 = vsub.f32 %v496, %v632
  %v634 = vand.u32 %v633, 4294901760
  %v635 = vsub.f32 %v633, %v634
  %v636 = vand.u32 %v635, 4294901760
  %637 = vmatmul.mubr.f32.gmra.mxu0 %v636
  %v638 = vpop.f32.mrf.mxu0
  %v639 = vadd.f32 0.0, %v638
  %v640 = vpop.f32.mrf.mxu0
  %641 = vmatprep.mubr.f32.mxu0 0.0
  %v642 = vand.u32 %v499, 4294901760
  %v643 = vsub.f32 %v499, %v642
  %v644 = vand.u32 %v643, 4294901760
  %v645 = vsub.f32 %v643, %v644
  %v646 = vand.u32 %v645, 4294901760
  %647 = vmatmul.mubr.f32.gmra.mxu0 %v646
  %v648 = vpop.f32.mrf.mxu0
  %v649 = vadd.f32 0.0, %v648
  %v650 = vpop.f32.mrf.mxu0
  %651 = vmatprep.mubr.f32.mxu0 0.0
  %v652 = vand.u32 %v502, 4294901760
  %v653 = vsub.f32 %v502, %v652
  %v654 = vand.u32 %v653, 4294901760
  %v655 = vsub.f32 %v653, %v654
  %v656 = vand.u32 %v655, 4294901760
  %657 = vmatmul.mubr.f32.gmra.mxu0 %v656
  %v658 = vpop.f32.mrf.mxu0
  %v659 = vadd.f32 0.0, %v658
  %v660 = vpop.f32.mrf.mxu0
  %661 = vmatprep.mubr.f32.mxu0 0.0
  %v662 = vand.u32 %v505, 4294901760
  %v663 = vsub.f32 %v505, %v662
  %v664 = vand.u32 %v663, 4294901760
  %v665 = vsub.f32 %v663, %v664
  %v666 = vand.u32 %v665, 4294901760
  %667 = vmatmul.mubr.f32.gmra.mxu0 %v666
  %v668 = vpop.f32.mrf.mxu0
  %v669 = vadd.f32 0.0, %v668
  %v670 = vpop.f32.mrf.mxu0
  %671 = vmatprep.mubr.f32.mxu0 0.0
  %v672 = vand.u32 %v508, 4294901760
  %v673 = vsub.f32 %v508, %v672
  %v674 = vand.u32 %v673, 4294901760
  %v675 = vsub.f32 %v673, %v674
  %v676 = vand.u32 %v675, 4294901760
  %677 = vmatmul.mubr.f32.gmra.mxu0 %v676
  %v678 = vpop.f32.mrf.mxu0
  %v679 = vadd.f32 0.0, %v678
  %v680 = vpop.f32.mrf.mxu0
  %681 = vmatprep.mubr.f32.mxu0 0.0
  %v682 = vand.u32 %v511, 4294901760
  %v683 = vsub.f32 %v511, %v682
  %v684 = vand.u32 %v683, 4294901760
  %v685 = vsub.f32 %v683, %v684
  %v686 = vand.u32 %v685, 4294901760
  %687 = vmatmul.mubr.f32.gmra.mxu0 %v686
  %v688 = vpop.f32.mrf.mxu0
  %v689 = vadd.f32 0.0, %v688
  %v690 = vpop.f32.mrf.mxu0
  %691 = vmatprep.mubr.f32.mxu0 0.0
  %v692 = vand.u32 %v514, 4294901760
  %v693 = vsub.f32 %v514, %v692
  %v694 = vand.u32 %v693, 4294901760
  %v695 = vsub.f32 %v693, %v694
  %v696 = vand.u32 %v695, 4294901760
  %697 = vmatmul.mubr.f32.gmra.mxu0 %v696
  %v698 = vpop.f32.mrf.mxu0
  %v699 = vadd.f32 0.0, %v698
  %v700 = vpop.f32.mrf.mxu0
  %701 = vmatprep.mubr.f32.mxu0 0.0
  %v702 = vand.u32 %v517, 4294901760
  %v703 = vsub.f32 %v517, %v702
  %v704 = vand.u32 %v703, 4294901760
  %v705 = vsub.f32 %v703, %v704
  %v706 = vand.u32 %v705, 4294901760
  %707 = vmatmul.mubr.f32.gmra.mxu0 %v706
  %v708 = vpop.f32.mrf.mxu0
  %v709 = vadd.f32 0.0, %v708
  %v710 = vpop.f32.mrf.mxu0
  %711 = vmatprep.mubr.f32.mxu0 0.0
  %v712 = vand.u32 %v520, 4294901760
  %v713 = vsub.f32 %v520, %v712
  %v714 = vand.u32 %v713, 4294901760
  %v715 = vsub.f32 %v713, %v714
  %v716 = vand.u32 %v715, 4294901760
  %717 = vmatmul.mubr.f32.gmra.mxu0 %v716
  %v718 = vpop.f32.mrf.mxu0
  %v719 = vadd.f32 0.0, %v718
  %v720 = vpop.f32.mrf.mxu0
  %721 = vmatprep.mubr.f32.mxu0 0.0
  %v722 = vand.u32 %v523, 4294901760
  %v723 = vsub.f32 %v523, %v722
  %v724 = vand.u32 %v723, 4294901760
  %v725 = vsub.f32 %v723, %v724
  %v726 = vand.u32 %v725, 4294901760
  %727 = vmatmul.mubr.f32.gmra.mxu0 %v726
  %v728 = vpop.f32.mrf.mxu0
  %v729 = vadd.f32 0.0, %v728
  %v730 = vpop.f32.mrf.mxu0
  %731 = vmatprep.mubr.f32.mxu0 0.0
  %v732 = vand.u32 %v526, 4294901760
  %v733 = vsub.f32 %v526, %v732
  %v734 = vand.u32 %v733, 4294901760
  %v735 = vsub.f32 %v733, %v734
  %v736 = vand.u32 %v735, 4294901760
  %737 = vmatmul.mubr.f32.gmra.mxu0 %v736
  %v738 = vpop.f32.mrf.mxu0
  %v739 = vadd.f32 0.0, %v738
  %v740 = vpop.f32.mrf.mxu0
  %741 = vmatprep.mubr.f32.mxu0 0.0
  %v742 = vand.u32 %v529, 4294901760
  %v743 = vsub.f32 %v529, %v742
  %v744 = vand.u32 %v743, 4294901760
  %v745 = vsub.f32 %v743, %v744
  %v746 = vand.u32 %v745, 4294901760
  %747 = vmatmul.mubr.f32.gmra.mxu0 %v746
  %v748 = vpop.f32.mrf.mxu0
  %v749 = vadd.f32 0.0, %v748
  %v750 = vpop.f32.mrf.mxu0
  %751 = vmatprep.mubr.f32.mxu0 0.0
  %v752 = vand.u32 %v532, 4294901760
  %v753 = vsub.f32 %v532, %v752
  %v754 = vand.u32 %v753, 4294901760
  %v755 = vsub.f32 %v753, %v754
  %v756 = vand.u32 %v755, 4294901760
  %757 = vmatmul.mubr.f32.gmra.mxu0 %v756
  %v758 = vpop.f32.mrf.mxu0
  %v759 = vadd.f32 0.0, %v758
  %v760 = vpop.f32.mrf.mxu0
  %761 = vdwg.mxu0
  %762 = vmatprep.subr.mxu0 0.0
  %763 = vmatpush1.msra.mxu0 0.0
  %764 = vmatprep.subr.mxu0 0.0
  %765 = vmatpush1.msra.mxu0 0.0
  %766 = vmatprep.subr.mxu0 0.0
  %767 = vmatpush1.msra.mxu0 0.0
  %768 = vmatprep.subr.mxu0 0.0
  %769 = vmatpush1.msra.mxu0 0.0
  %770 = vmatprep.subr.mxu0 0.0
  %771 = vmatpush1.msra.mxu0 0.0
  %772 = vmatprep.subr.mxu0 0.0
  %773 = vmatpush1.msra.mxu0 0.0
  %774 = vmatprep.subr.mxu0 0.0
  %775 = vmatpush1.msra.mxu0 0.0
  %776 = vmatprep.subr.mxu0 0.0
  %777 = vmatpush1.msra.mxu0 0.0
  %778 = vmatprep.subr.mxu0 0.0
  %779 = vmatpush1.msra.mxu0 0.0
  %780 = vmatprep.subr.mxu0 0.0
  %781 = vmatpush1.msra.mxu0 0.0
  %782 = vmatprep.subr.mxu0 0.0
  %783 = vmatpush1.msra.mxu0 0.0
  %784 = vmatprep.subr.mxu0 0.0
  %785 = vmatpush1.msra.mxu0 0.0
  %786 = vmatprep.subr.mxu0 0.0
  %787 = vmatpush1.msra.mxu0 0.0
  %788 = vmatprep.subr.mxu0 0.0
  %v789 = vand.u32 %v33, 4294901760
  %v790 = vsub.f32 %v33, %v789
  %v791 = vand.u32 %v790, 4294901760
  %v792 = vsub.f32 %v790, %v791
  %v793 = vand.u32 %v792, 4294901760
  %794 = vmatpush1.msra.mxu0 %v793
  %795 = vmatprep.subr.mxu0 0.0
  %v796 = vand.u32 %v32, 4294901760
  %v797 = vsub.f32 %v32, %v796
  %v798 = vand.u32 %v797, 4294901760
  %v799 = vsub.f32 %v797, %v798
  %v800 = vand.u32 %v799, 4294901760
  %801 = vmatpush1.msra.mxu0 %v800
  %802 = vmatprep.subr.mxu0 0.0
  %v803 = vand.u32 %v31, 4294901760
  %v804 = vsub.f32 %v31, %v803
  %v805 = vand.u32 %v804, 4294901760
  %v806 = vsub.f32 %v804, %v805
  %v807 = vand.u32 %v806, 4294901760
  %808 = vmatpush1.msra.mxu0 %v807
  %809 = vmatprep.subr.mxu0 0.0
  %810 = vmatpush2.msra.mxu0 0.0
  %811 = vmatprep.subr.mxu0 0.0
  %812 = vmatpush2.msra.mxu0 0.0
  %813 = vmatprep.subr.mxu0 0.0
  %814 = vmatpush2.msra.mxu0 0.0
  %815 = vmatprep.subr.mxu0 0.0
  %816 = vmatpush2.msra.mxu0 0.0
  %817 = vmatprep.subr.mxu0 0.0
  %818 = vmatpush2.msra.mxu0 0.0
  %819 = vmatprep.subr.mxu0 0.0
  %820 = vmatpush2.msra.mxu0 0.0
  %821 = vmatprep.subr.mxu0 0.0
  %822 = vmatpush2.msra.mxu0 0.0
  %823 = vmatprep.subr.mxu0 0.0
  %824 = vmatpush2.msra.mxu0 0.0
  %825 = vmatprep.subr.mxu0 0.0
  %826 = vmatpush2.msra.mxu0 0.0
  %827 = vmatprep.subr.mxu0 0.0
  %828 = vmatpush2.msra.mxu0 0.0
  %829 = vmatprep.subr.mxu0 0.0
  %830 = vmatpush2.msra.mxu0 0.0
  %831 = vmatprep.subr.mxu0 0.0
  %832 = vmatpush2.msra.mxu0 0.0
  %833 = vmatprep.subr.mxu0 0.0
  %834 = vmatpush2.msra.mxu0 0.0
  %835 = vmatprep.subr.mxu0 0.0
  %836 = vmatpush2.msra.mxu0 0.0
  %837 = vmatprep.subr.mxu0 0.0
  %838 = vmatpush2.msra.mxu0 0.0
  %839 = vmatprep.subr.mxu0 0.0
  %840 = vmatpush2.msra.mxu0 0.0
  %841 = vmatprep.mubr.f32.mxu0 0.0
  %v842 = vand.u32 %v487, 4294901760
  %843 = vmatmul.mubr.f32.gmra.mxu0 %v842
  %v844 = vpop.f32.mrf.mxu0
  %v845 = vadd.f32 %v609, %v844
  %v846 = vpop.f32.mrf.mxu0
  %847 = vmatprep.mubr.f32.mxu0 0.0
  %v848 = vand.u32 %v490, 4294901760
  %849 = vmatmul.mubr.f32.gmra.mxu0 %v848
  %v850 = vpop.f32.mrf.mxu0
  %v851 = vadd.f32 %v619, %v850
  %v852 = vpop.f32.mrf.mxu0
  %853 = vmatprep.mubr.f32.mxu0 0.0
  %v854 = vand.u32 %v493, 4294901760
  %855 = vmatmul.mubr.f32.gmra.mxu0 %v854
  %v856 = vpop.f32.mrf.mxu0
  %v857 = vadd.f32 %v629, %v856
  %v858 = vpop.f32.mrf.mxu0
  %859 = vmatprep.mubr.f32.mxu0 0.0
  %v860 = vand.u32 %v496, 4294901760
  %861 = vmatmul.mubr.f32.gmra.mxu0 %v860
  %v862 = vpop.f32.mrf.mxu0
  %v863 = vadd.f32 %v639, %v862
  %v864 = vpop.f32.mrf.mxu0
  %865 = vmatprep.mubr.f32.mxu0 0.0
  %v866 = vand.u32 %v499, 4294901760
  %867 = vmatmul.mubr.f32.gmra.mxu0 %v866
  %v868 = vpop.f32.mrf.mxu0
  %v869 = vadd.f32 %v649, %v868
  %v870 = vpop.f32.mrf.mxu0
  %871 = vmatprep.mubr.f32.mxu0 0.0
  %v872 = vand.u32 %v502, 4294901760
  %873 = vmatmul.mubr.f32.gmra.mxu0 %v872
  %v874 = vpop.f32.mrf.mxu0
  %v875 = vadd.f32 %v659, %v874
  %v876 = vpop.f32.mrf.mxu0
  %877 = vmatprep.mubr.f32.mxu0 0.0
  %v878 = vand.u32 %v505, 4294901760
  %879 = vmatmul.mubr.f32.gmra.mxu0 %v878
  %v880 = vpop.f32.mrf.mxu0
  %v881 = vadd.f32 %v669, %v880
  %v882 = vpop.f32.mrf.mxu0
  %883 = vmatprep.mubr.f32.mxu0 0.0
  %v884 = vand.u32 %v508, 4294901760
  %885 = vmatmul.mubr.f32.gmra.mxu0 %v884
  %v886 = vpop.f32.mrf.mxu0
  %v887 = vadd.f32 %v679, %v886
  %v888 = vpop.f32.mrf.mxu0
  %889 = vmatprep.mubr.f32.mxu0 0.0
  %v890 = vand.u32 %v511, 4294901760
  %891 = vmatmul.mubr.f32.gmra.mxu0 %v890
  %v892 = vpop.f32.mrf.mxu0
  %v893 = vadd.f32 %v689, %v892
  %v894 = vpop.f32.mrf.mxu0
  %895 = vmatprep.mubr.f32.mxu0 0.0
  %v896 = vand.u32 %v514, 4294901760
  %897 = vmatmul.mubr.f32.gmra.mxu0 %v896
  %v898 = vpop.f32.mrf.mxu0
  %v899 = vadd.f32 %v699, %v898
  %v900 = vpop.f32.mrf.mxu0
  %901 = vmatprep.mubr.f32.mxu0 0.0
  %v902 = vand.u32 %v517, 4294901760
  %903 = vmatmul.mubr.f32.gmra.mxu0 %v902
  %v904 = vpop.f32.mrf.mxu0
  %v905 = vadd.f32 %v709, %v904
  %v906 = vpop.f32.mrf.mxu0
  %907 = vmatprep.mubr.f32.mxu0 0.0
  %v908 = vand.u32 %v520, 4294901760
  %909 = vmatmul.mubr.f32.gmra.mxu0 %v908
  %v910 = vpop.f32.mrf.mxu0
  %v911 = vadd.f32 %v719, %v910
  %v912 = vpop.f32.mrf.mxu0
  %913 = vmatprep.mubr.f32.mxu0 0.0
  %v914 = vand.u32 %v523, 4294901760
  %915 = vmatmul.mubr.f32.gmra.mxu0 %v914
  %v916 = vpop.f32.mrf.mxu0
  %v917 = vadd.f32 %v729, %v916
  %v918 = vpop.f32.mrf.mxu0
  %919 = vmatprep.mubr.f32.mxu0 0.0
  %v920 = vand.u32 %v526, 4294901760
  %921 = vmatmul.mubr.f32.gmra.mxu0 %v920
  %v922 = vpop.f32.mrf.mxu0
  %v923 = vadd.f32 %v739, %v922
  %v924 = vpop.f32.mrf.mxu0
  %925 = vmatprep.mubr.f32.mxu0 0.0
  %v926 = vand.u32 %v529, 4294901760
  %927 = vmatmul.mubr.f32.gmra.mxu0 %v926
  %v928 = vpop.f32.mrf.mxu0
  %v929 = vadd.f32 %v749, %v928
  %v930 = vpop.f32.mrf.mxu0
  %931 = vmatprep.mubr.f32.mxu0 0.0
  %v932 = vand.u32 %v532, 4294901760
  %933 = vmatmul.mubr.f32.gmra.mxu0 %v932
  %v934 = vpop.f32.mrf.mxu0
  %v935 = vadd.f32 %v759, %v934
  %v936 = vpop.f32.mrf.mxu0
  %937 = vdwg.mxu0
  %938 = vmatprep.subr.mxu0 0.0
  %939 = vmatpush1.msra.mxu0 0.0
  %940 = vmatprep.subr.mxu0 0.0
  %941 = vmatpush1.msra.mxu0 0.0
  %942 = vmatprep.subr.mxu0 0.0
  %943 = vmatpush1.msra.mxu0 0.0
  %944 = vmatprep.subr.mxu0 0.0
  %945 = vmatpush1.msra.mxu0 0.0
  %946 = vmatprep.subr.mxu0 0.0
  %947 = vmatpush1.msra.mxu0 0.0
  %948 = vmatprep.subr.mxu0 0.0
  %949 = vmatpush1.msra.mxu0 0.0
  %950 = vmatprep.subr.mxu0 0.0
  %951 = vmatpush1.msra.mxu0 0.0
  %952 = vmatprep.subr.mxu0 0.0
  %953 = vmatpush1.msra.mxu0 0.0
  %954 = vmatprep.subr.mxu0 0.0
  %955 = vmatpush1.msra.mxu0 0.0
  %956 = vmatprep.subr.mxu0 0.0
  %957 = vmatpush1.msra.mxu0 0.0
  %958 = vmatprep.subr.mxu0 0.0
  %959 = vmatpush1.msra.mxu0 0.0
  %960 = vmatprep.subr.mxu0 0.0
  %961 = vmatpush1.msra.mxu0 0.0
  %962 = vmatprep.subr.mxu0 0.0
  %963 = vmatpush1.msra.mxu0 0.0
  %964 = vmatprep.subr.mxu0 0.0
  %v965 = vand.u32 %v33, 4294901760
  %v966 = vsub.f32 %v33, %v965
  %967 = vmatpush1.msra.mxu0 %v966
  %968 = vmatprep.subr.mxu0 0.0
  %v969 = vand.u32 %v32, 4294901760
  %v970 = vsub.f32 %v32, %v969
  %971 = vmatpush1.msra.mxu0 %v970
  %972 = vmatprep.subr.mxu0 0.0
  %v973 = vand.u32 %v31, 4294901760
  %v974 = vsub.f32 %v31, %v973
  %975 = vmatpush1.msra.mxu0 %v974
  %976 = vmatprep.subr.mxu0 0.0
  %977 = vmatpush2.msra.mxu0 0.0
  %978 = vmatprep.subr.mxu0 0.0
  %979 = vmatpush2.msra.mxu0 0.0
  %980 = vmatprep.subr.mxu0 0.0
  %981 = vmatpush2.msra.mxu0 0.0
  %982 = vmatprep.subr.mxu0 0.0
  %983 = vmatpush2.msra.mxu0 0.0
  %984 = vmatprep.subr.mxu0 0.0
  %985 = vmatpush2.msra.mxu0 0.0
  %986 = vmatprep.subr.mxu0 0.0
  %987 = vmatpush2.msra.mxu0 0.0
  %988 = vmatprep.subr.mxu0 0.0
  %989 = vmatpush2.msra.mxu0 0.0
  %990 = vmatprep.subr.mxu0 0.0
  %991 = vmatpush2.msra.mxu0 0.0
  %992 = vmatprep.subr.mxu0 0.0
  %993 = vmatpush2.msra.mxu0 0.0
  %994 = vmatprep.subr.mxu0 0.0
  %995 = vmatpush2.msra.mxu0 0.0
  %996 = vmatprep.subr.mxu0 0.0
  %997 = vmatpush2.msra.mxu0 0.0
  %998 = vmatprep.subr.mxu0 0.0
  %999 = vmatpush2.msra.mxu0 0.0
  %1000 = vmatprep.subr.mxu0 0.0
  %1001 = vmatpush2.msra.mxu0 0.0
  %1002 = vmatprep.subr.mxu0 0.0
  %1003 = vmatpush2.msra.mxu0 0.0
  %1004 = vmatprep.subr.mxu0 0.0
  %1005 = vmatpush2.msra.mxu0 0.0
  %1006 = vmatprep.subr.mxu0 0.0
  %1007 = vmatpush2.msra.mxu0 0.0
  %1008 = vmatprep.mubr.f32.mxu0 0.0
  %v1009 = vand.u32 %v487, 4294901760
  %v1010 = vsub.f32 %v487, %v1009
  %1011 = vmatmul.mubr.f32.gmra.mxu0 %v1010
  %v1012 = vpop.f32.mrf.mxu0
  %v1013 = vadd.f32 %v845, %v1012
  %v1014 = vpop.f32.mrf.mxu0
  %1015 = vmatprep.mubr.f32.mxu0 0.0
  %v1016 = vand.u32 %v490, 4294901760
  %v1017 = vsub.f32 %v490, %v1016
  %1018 = vmatmul.mubr.f32.gmra.mxu0 %v1017
  %v1019 = vpop.f32.mrf.mxu0
  %v1020 = vadd.f32 %v851, %v1019
  %v1021 = vpop.f32.mrf.mxu0
  %1022 = vmatprep.mubr.f32.mxu0 0.0
  %v1023 = vand.u32 %v493, 4294901760
  %v1024 = vsub.f32 %v493, %v1023
  %1025 = vmatmul.mubr.f32.gmra.mxu0 %v1024
  %v1026 = vpop.f32.mrf.mxu0
  %v1027 = vadd.f32 %v857, %v1026
  %v1028 = vpop.f32.mrf.mxu0
  %1029 = vmatprep.mubr.f32.mxu0 0.0
  %v1030 = vand.u32 %v496, 4294901760
  %v1031 = vsub.f32 %v496, %v1030
  %1032 = vmatmul.mubr.f32.gmra.mxu0 %v1031
  %v1033 = vpop.f32.mrf.mxu0
  %v1034 = vadd.f32 %v863, %v1033
  %v1035 = vpop.f32.mrf.mxu0
  %1036 = vmatprep.mubr.f32.mxu0 0.0
  %v1037 = vand.u32 %v499, 4294901760
  %v1038 = vsub.f32 %v499, %v1037
  %1039 = vmatmul.mubr.f32.gmra.mxu0 %v1038
  %v1040 = vpop.f32.mrf.mxu0
  %v1041 = vadd.f32 %v869, %v1040
  %v1042 = vpop.f32.mrf.mxu0
  %1043 = vmatprep.mubr.f32.mxu0 0.0
  %v1044 = vand.u32 %v502, 4294901760
  %v1045 = vsub.f32 %v502, %v1044
  %1046 = vmatmul.mubr.f32.gmra.mxu0 %v1045
  %v1047 = vpop.f32.mrf.mxu0
  %v1048 = vadd.f32 %v875, %v1047
  %v1049 = vpop.f32.mrf.mxu0
  %1050 = vmatprep.mubr.f32.mxu0 0.0
  %v1051 = vand.u32 %v505, 4294901760
  %v1052 = vsub.f32 %v505, %v1051
  %1053 = vmatmul.mubr.f32.gmra.mxu0 %v1052
  %v1054 = vpop.f32.mrf.mxu0
  %v1055 = vadd.f32 %v881, %v1054
  %v1056 = vpop.f32.mrf.mxu0
  %1057 = vmatprep.mubr.f32.mxu0 0.0
  %v1058 = vand.u32 %v508, 4294901760
  %v1059 = vsub.f32 %v508, %v1058
  %1060 = vmatmul.mubr.f32.gmra.mxu0 %v1059
  %v1061 = vpop.f32.mrf.mxu0
  %v1062 = vadd.f32 %v887, %v1061
  %v1063 = vpop.f32.mrf.mxu0
  %1064 = vmatprep.mubr.f32.mxu0 0.0
  %v1065 = vand.u32 %v511, 4294901760
  %v1066 = vsub.f32 %v511, %v1065
  %1067 = vmatmul.mubr.f32.gmra.mxu0 %v1066
  %v1068 = vpop.f32.mrf.mxu0
  %v1069 = vadd.f32 %v893, %v1068
  %v1070 = vpop.f32.mrf.mxu0
  %1071 = vmatprep.mubr.f32.mxu0 0.0
  %v1072 = vand.u32 %v514, 4294901760
  %v1073 = vsub.f32 %v514, %v1072
  %1074 = vmatmul.mubr.f32.gmra.mxu0 %v1073
  %v1075 = vpop.f32.mrf.mxu0
  %v1076 = vadd.f32 %v899, %v1075
  %v1077 = vpop.f32.mrf.mxu0
  %1078 = vmatprep.mubr.f32.mxu0 0.0
  %v1079 = vand.u32 %v517, 4294901760
  %v1080 = vsub.f32 %v517, %v1079
  %1081 = vmatmul.mubr.f32.gmra.mxu0 %v1080
  %v1082 = vpop.f32.mrf.mxu0
  %v1083 = vadd.f32 %v905, %v1082
  %v1084 = vpop.f32.mrf.mxu0
  %1085 = vmatprep.mubr.f32.mxu0 0.0
  %v1086 = vand.u32 %v520, 4294901760
  %v1087 = vsub.f32 %v520, %v1086
  %1088 = vmatmul.mubr.f32.gmra.mxu0 %v1087
  %v1089 = vpop.f32.mrf.mxu0
  %v1090 = vadd.f32 %v911, %v1089
  %v1091 = vpop.f32.mrf.mxu0
  %1092 = vmatprep.mubr.f32.mxu0 0.0
  %v1093 = vand.u32 %v523, 4294901760
  %v1094 = vsub.f32 %v523, %v1093
  %1095 = vmatmul.mubr.f32.gmra.mxu0 %v1094
  %v1096 = vpop.f32.mrf.mxu0
  %v1097 = vadd.f32 %v917, %v1096
  %v1098 = vpop.f32.mrf.mxu0
  %1099 = vmatprep.mubr.f32.mxu0 0.0
  %v1100 = vand.u32 %v526, 4294901760
  %v1101 = vsub.f32 %v526, %v1100
  %1102 = vmatmul.mubr.f32.gmra.mxu0 %v1101
  %v1103 = vpop.f32.mrf.mxu0
  %v1104 = vadd.f32 %v923, %v1103
  %v1105 = vpop.f32.mrf.mxu0
  %1106 = vmatprep.mubr.f32.mxu0 0.0
  %v1107 = vand.u32 %v529, 4294901760
  %v1108 = vsub.f32 %v529, %v1107
  %1109 = vmatmul.mubr.f32.gmra.mxu0 %v1108
  %v1110 = vpop.f32.mrf.mxu0
  %v1111 = vadd.f32 %v929, %v1110
  %v1112 = vpop.f32.mrf.mxu0
  %1113 = vmatprep.mubr.f32.mxu0 0.0
  %v1114 = vand.u32 %v532, 4294901760
  %v1115 = vsub.f32 %v532, %v1114
  %1116 = vmatmul.mubr.f32.gmra.mxu0 %v1115
  %v1117 = vpop.f32.mrf.mxu0
  %v1118 = vadd.f32 %v935, %v1117
  %v1119 = vpop.f32.mrf.mxu0
  %1120 = vdwg.mxu0
  %1121 = vmatprep.subr.mxu0 0.0
  %1122 = vmatpush1.msra.mxu0 0.0
  %1123 = vmatprep.subr.mxu0 0.0
  %1124 = vmatpush1.msra.mxu0 0.0
  %1125 = vmatprep.subr.mxu0 0.0
  %1126 = vmatpush1.msra.mxu0 0.0
  %1127 = vmatprep.subr.mxu0 0.0
  %1128 = vmatpush1.msra.mxu0 0.0
  %1129 = vmatprep.subr.mxu0 0.0
  %1130 = vmatpush1.msra.mxu0 0.0
  %1131 = vmatprep.subr.mxu0 0.0
  %1132 = vmatpush1.msra.mxu0 0.0
  %1133 = vmatprep.subr.mxu0 0.0
  %1134 = vmatpush1.msra.mxu0 0.0
  %1135 = vmatprep.subr.mxu0 0.0
  %1136 = vmatpush1.msra.mxu0 0.0
  %1137 = vmatprep.subr.mxu0 0.0
  %1138 = vmatpush1.msra.mxu0 0.0
  %1139 = vmatprep.subr.mxu0 0.0
  %1140 = vmatpush1.msra.mxu0 0.0
  %1141 = vmatprep.subr.mxu0 0.0
  %1142 = vmatpush1.msra.mxu0 0.0
  %1143 = vmatprep.subr.mxu0 0.0
  %1144 = vmatpush1.msra.mxu0 0.0
  %1145 = vmatprep.subr.mxu0 0.0
  %1146 = vmatpush1.msra.mxu0 0.0
  %1147 = vmatprep.subr.mxu0 0.0
  %v1148 = vand.u32 %v33, 4294901760
  %1149 = vmatpush1.msra.mxu0 %v1148
  %1150 = vmatprep.subr.mxu0 0.0
  %v1151 = vand.u32 %v32, 4294901760
  %1152 = vmatpush1.msra.mxu0 %v1151
  %1153 = vmatprep.subr.mxu0 0.0
  %v1154 = vand.u32 %v31, 4294901760
  %1155 = vmatpush1.msra.mxu0 %v1154
  %1156 = vmatprep.subr.mxu0 0.0
  %1157 = vmatpush2.msra.mxu0 0.0
  %1158 = vmatprep.subr.mxu0 0.0
  %1159 = vmatpush2.msra.mxu0 0.0
  %1160 = vmatprep.subr.mxu0 0.0
  %1161 = vmatpush2.msra.mxu0 0.0
  %1162 = vmatprep.subr.mxu0 0.0
  %1163 = vmatpush2.msra.mxu0 0.0
  %1164 = vmatprep.subr.mxu0 0.0
  %1165 = vmatpush2.msra.mxu0 0.0
  %1166 = vmatprep.subr.mxu0 0.0
  %1167 = vmatpush2.msra.mxu0 0.0
  %1168 = vmatprep.subr.mxu0 0.0
  %1169 = vmatpush2.msra.mxu0 0.0
  %1170 = vmatprep.subr.mxu0 0.0
  %1171 = vmatpush2.msra.mxu0 0.0
  %1172 = vmatprep.subr.mxu0 0.0
  %1173 = vmatpush2.msra.mxu0 0.0
  %1174 = vmatprep.subr.mxu0 0.0
  %1175 = vmatpush2.msra.mxu0 0.0
  %1176 = vmatprep.subr.mxu0 0.0
  %1177 = vmatpush2.msra.mxu0 0.0
  %1178 = vmatprep.subr.mxu0 0.0
  %1179 = vmatpush2.msra.mxu0 0.0
  %1180 = vmatprep.subr.mxu0 0.0
  %1181 = vmatpush2.msra.mxu0 0.0
  %1182 = vmatprep.subr.mxu0 0.0
  %1183 = vmatpush2.msra.mxu0 0.0
  %1184 = vmatprep.subr.mxu0 0.0
  %1185 = vmatpush2.msra.mxu0 0.0
  %1186 = vmatprep.subr.mxu0 0.0
  %1187 = vmatpush2.msra.mxu0 0.0
  %1188 = vmatprep.mubr.f32.mxu0 0.0
  %v1189 = vand.u32 %v487, 4294901760
  %v1190 = vsub.f32 %v487, %v1189
  %v1191 = vand.u32 %v1190, 4294901760
  %1192 = vmatmul.mubr.f32.gmra.mxu0 %v1191
  %v1193 = vpop.f32.mrf.mxu0
  %v1194 = vadd.f32 %v1013, %v1193
  %v1195 = vpop.f32.mrf.mxu0
  %1196 = vmatprep.mubr.f32.mxu0 0.0
  %v1197 = vand.u32 %v490, 4294901760
  %v1198 = vsub.f32 %v490, %v1197
  %v1199 = vand.u32 %v1198, 4294901760
  %1200 = vmatmul.mubr.f32.gmra.mxu0 %v1199
  %v1201 = vpop.f32.mrf.mxu0
  %v1202 = vadd.f32 %v1020, %v1201
  %v1203 = vpop.f32.mrf.mxu0
  %1204 = vmatprep.mubr.f32.mxu0 0.0
  %v1205 = vand.u32 %v493, 4294901760
  %v1206 = vsub.f32 %v493, %v1205
  %v1207 = vand.u32 %v1206, 4294901760
  %1208 = vmatmul.mubr.f32.gmra.mxu0 %v1207
  %v1209 = vpop.f32.mrf.mxu0
  %v1210 = vadd.f32 %v1027, %v1209
  %v1211 = vpop.f32.mrf.mxu0
  %1212 = vmatprep.mubr.f32.mxu0 0.0
  %v1213 = vand.u32 %v496, 4294901760
  %v1214 = vsub.f32 %v496, %v1213
  %v1215 = vand.u32 %v1214, 4294901760
  %1216 = vmatmul.mubr.f32.gmra.mxu0 %v1215
  %v1217 = vpop.f32.mrf.mxu0
  %v1218 = vadd.f32 %v1034, %v1217
  %v1219 = vpop.f32.mrf.mxu0
  %1220 = vmatprep.mubr.f32.mxu0 0.0
  %v1221 = vand.u32 %v499, 4294901760
  %v1222 = vsub.f32 %v499, %v1221
  %v1223 = vand.u32 %v1222, 4294901760
  %1224 = vmatmul.mubr.f32.gmra.mxu0 %v1223
  %v1225 = vpop.f32.mrf.mxu0
  %v1226 = vadd.f32 %v1041, %v1225
  %v1227 = vpop.f32.mrf.mxu0
  %1228 = vmatprep.mubr.f32.mxu0 0.0
  %v1229 = vand.u32 %v502, 4294901760
  %v1230 = vsub.f32 %v502, %v1229
  %v1231 = vand.u32 %v1230, 4294901760
  %1232 = vmatmul.mubr.f32.gmra.mxu0 %v1231
  %v1233 = vpop.f32.mrf.mxu0
  %v1234 = vadd.f32 %v1048, %v1233
  %v1235 = vpop.f32.mrf.mxu0
  %1236 = vmatprep.mubr.f32.mxu0 0.0
  %v1237 = vand.u32 %v505, 4294901760
  %v1238 = vsub.f32 %v505, %v1237
  %v1239 = vand.u32 %v1238, 4294901760
  %1240 = vmatmul.mubr.f32.gmra.mxu0 %v1239
  %v1241 = vpop.f32.mrf.mxu0
  %v1242 = vadd.f32 %v1055, %v1241
  %v1243 = vpop.f32.mrf.mxu0
  %1244 = vmatprep.mubr.f32.mxu0 0.0
  %v1245 = vand.u32 %v508, 4294901760
  %v1246 = vsub.f32 %v508, %v1245
  %v1247 = vand.u32 %v1246, 4294901760
  %1248 = vmatmul.mubr.f32.gmra.mxu0 %v1247
  %v1249 = vpop.f32.mrf.mxu0
  %v1250 = vadd.f32 %v1062, %v1249
  %v1251 = vpop.f32.mrf.mxu0
  %1252 = vmatprep.mubr.f32.mxu0 0.0
  %v1253 = vand.u32 %v511, 4294901760
  %v1254 = vsub.f32 %v511, %v1253
  %v1255 = vand.u32 %v1254, 4294901760
  %1256 = vmatmul.mubr.f32.gmra.mxu0 %v1255
  %v1257 = vpop.f32.mrf.mxu0
  %v1258 = vadd.f32 %v1069, %v1257
  %v1259 = vpop.f32.mrf.mxu0
  %1260 = vmatprep.mubr.f32.mxu0 0.0
  %v1261 = vand.u32 %v514, 4294901760
  %v1262 = vsub.f32 %v514, %v1261
  %v1263 = vand.u32 %v1262, 4294901760
  %1264 = vmatmul.mubr.f32.gmra.mxu0 %v1263
  %v1265 = vpop.f32.mrf.mxu0
  %v1266 = vadd.f32 %v1076, %v1265
  %v1267 = vpop.f32.mrf.mxu0
  %1268 = vmatprep.mubr.f32.mxu0 0.0
  %v1269 = vand.u32 %v517, 4294901760
  %v1270 = vsub.f32 %v517, %v1269
  %v1271 = vand.u32 %v1270, 4294901760
  %1272 = vmatmul.mubr.f32.gmra.mxu0 %v1271
  %v1273 = vpop.f32.mrf.mxu0
  %v1274 = vadd.f32 %v1083, %v1273
  %v1275 = vpop.f32.mrf.mxu0
  %1276 = vmatprep.mubr.f32.mxu0 0.0
  %v1277 = vand.u32 %v520, 4294901760
  %v1278 = vsub.f32 %v520, %v1277
  %v1279 = vand.u32 %v1278, 4294901760
  %1280 = vmatmul.mubr.f32.gmra.mxu0 %v1279
  %v1281 = vpop.f32.mrf.mxu0
  %v1282 = vadd.f32 %v1090, %v1281
  %v1283 = vpop.f32.mrf.mxu0
  %1284 = vmatprep.mubr.f32.mxu0 0.0
  %v1285 = vand.u32 %v523, 4294901760
  %v1286 = vsub.f32 %v523, %v1285
  %v1287 = vand.u32 %v1286, 4294901760
  %1288 = vmatmul.mubr.f32.gmra.mxu0 %v1287
  %v1289 = vpop.f32.mrf.mxu0
  %v1290 = vadd.f32 %v1097, %v1289
  %v1291 = vpop.f32.mrf.mxu0
  %1292 = vmatprep.mubr.f32.mxu0 0.0
  %v1293 = vand.u32 %v526, 4294901760
  %v1294 = vsub.f32 %v526, %v1293
  %v1295 = vand.u32 %v1294, 4294901760
  %1296 = vmatmul.mubr.f32.gmra.mxu0 %v1295
  %v1297 = vpop.f32.mrf.mxu0
  %v1298 = vadd.f32 %v1104, %v1297
  %v1299 = vpop.f32.mrf.mxu0
  %1300 = vmatprep.mubr.f32.mxu0 0.0
  %v1301 = vand.u32 %v529, 4294901760
  %v1302 = vsub.f32 %v529, %v1301
  %v1303 = vand.u32 %v1302, 4294901760
  %1304 = vmatmul.mubr.f32.gmra.mxu0 %v1303
  %v1305 = vpop.f32.mrf.mxu0
  %v1306 = vadd.f32 %v1111, %v1305
  %v1307 = vpop.f32.mrf.mxu0
  %1308 = vmatprep.mubr.f32.mxu0 0.0
  %v1309 = vand.u32 %v532, 4294901760
  %v1310 = vsub.f32 %v532, %v1309
  %v1311 = vand.u32 %v1310, 4294901760
  %1312 = vmatmul.mubr.f32.gmra.mxu0 %v1311
  %v1313 = vpop.f32.mrf.mxu0
  %v1314 = vadd.f32 %v1118, %v1313
  %v1315 = vpop.f32.mrf.mxu0
  %1316 = vdwg.mxu0
  %1317 = vmatprep.subr.mxu0 0.0
  %1318 = vmatpush1.msra.mxu0 0.0
  %1319 = vmatprep.subr.mxu0 0.0
  %1320 = vmatpush1.msra.mxu0 0.0
  %1321 = vmatprep.subr.mxu0 0.0
  %1322 = vmatpush1.msra.mxu0 0.0
  %1323 = vmatprep.subr.mxu0 0.0
  %1324 = vmatpush1.msra.mxu0 0.0
  %1325 = vmatprep.subr.mxu0 0.0
  %1326 = vmatpush1.msra.mxu0 0.0
  %1327 = vmatprep.subr.mxu0 0.0
  %1328 = vmatpush1.msra.mxu0 0.0
  %1329 = vmatprep.subr.mxu0 0.0
  %1330 = vmatpush1.msra.mxu0 0.0
  %1331 = vmatprep.subr.mxu0 0.0
  %1332 = vmatpush1.msra.mxu0 0.0
  %1333 = vmatprep.subr.mxu0 0.0
  %1334 = vmatpush1.msra.mxu0 0.0
  %1335 = vmatprep.subr.mxu0 0.0
  %1336 = vmatpush1.msra.mxu0 0.0
  %1337 = vmatprep.subr.mxu0 0.0
  %1338 = vmatpush1.msra.mxu0 0.0
  %1339 = vmatprep.subr.mxu0 0.0
  %1340 = vmatpush1.msra.mxu0 0.0
  %1341 = vmatprep.subr.mxu0 0.0
  %1342 = vmatpush1.msra.mxu0 0.0
  %1343 = vmatprep.subr.mxu0 0.0
  %v1344 = vand.u32 %v33, 4294901760
  %v1345 = vsub.f32 %v33, %v1344
  %v1346 = vand.u32 %v1345, 4294901760
  %1347 = vmatpush1.msra.mxu0 %v1346
  %1348 = vmatprep.subr.mxu0 0.0
  %v1349 = vand.u32 %v32, 4294901760
  %v1350 = vsub.f32 %v32, %v1349
  %v1351 = vand.u32 %v1350, 4294901760
  %1352 = vmatpush1.msra.mxu0 %v1351
  %1353 = vmatprep.subr.mxu0 0.0
  %v1354 = vand.u32 %v31, 4294901760
  %v1355 = vsub.f32 %v31, %v1354
  %v1356 = vand.u32 %v1355, 4294901760
  %1357 = vmatpush1.msra.mxu0 %v1356
  %1358 = vmatprep.subr.mxu0 0.0
  %1359 = vmatpush2.msra.mxu0 0.0
  %1360 = vmatprep.subr.mxu0 0.0
  %1361 = vmatpush2.msra.mxu0 0.0
  %1362 = vmatprep.subr.mxu0 0.0
  %1363 = vmatpush2.msra.mxu0 0.0
  %1364 = vmatprep.subr.mxu0 0.0
  %1365 = vmatpush2.msra.mxu0 0.0
  %1366 = vmatprep.subr.mxu0 0.0
  %1367 = vmatpush2.msra.mxu0 0.0
  %1368 = vmatprep.subr.mxu0 0.0
  %1369 = vmatpush2.msra.mxu0 0.0
  %1370 = vmatprep.subr.mxu0 0.0
  %1371 = vmatpush2.msra.mxu0 0.0
  %1372 = vmatprep.subr.mxu0 0.0
  %1373 = vmatpush2.msra.mxu0 0.0
  %1374 = vmatprep.subr.mxu0 0.0
  %1375 = vmatpush2.msra.mxu0 0.0
  %1376 = vmatprep.subr.mxu0 0.0
  %1377 = vmatpush2.msra.mxu0 0.0
  %1378 = vmatprep.subr.mxu0 0.0
  %1379 = vmatpush2.msra.mxu0 0.0
  %1380 = vmatprep.subr.mxu0 0.0
  %1381 = vmatpush2.msra.mxu0 0.0
  %1382 = vmatprep.subr.mxu0 0.0
  %1383 = vmatpush2.msra.mxu0 0.0
  %1384 = vmatprep.subr.mxu0 0.0
  %1385 = vmatpush2.msra.mxu0 0.0
  %1386 = vmatprep.subr.mxu0 0.0
  %1387 = vmatpush2.msra.mxu0 0.0
  %1388 = vmatprep.subr.mxu0 0.0
  %1389 = vmatpush2.msra.mxu0 0.0
  %1390 = vmatprep.mubr.f32.mxu0 0.0
  %v1391 = vand.u32 %v487, 4294901760
  %1392 = vmatmul.mubr.f32.gmra.mxu0 %v1391
  %v1393 = vpop.f32.mrf.mxu0
  %v1394 = vadd.f32 %v1194, %v1393
  %v1395 = vpop.f32.mrf.mxu0
  %1396 = vmatprep.mubr.f32.mxu0 0.0
  %v1397 = vand.u32 %v490, 4294901760
  %1398 = vmatmul.mubr.f32.gmra.mxu0 %v1397
  %v1399 = vpop.f32.mrf.mxu0
  %v1400 = vadd.f32 %v1202, %v1399
  %v1401 = vpop.f32.mrf.mxu0
  %1402 = vmatprep.mubr.f32.mxu0 0.0
  %v1403 = vand.u32 %v493, 4294901760
  %1404 = vmatmul.mubr.f32.gmra.mxu0 %v1403
  %v1405 = vpop.f32.mrf.mxu0
  %v1406 = vadd.f32 %v1210, %v1405
  %v1407 = vpop.f32.mrf.mxu0
  %1408 = vmatprep.mubr.f32.mxu0 0.0
  %v1409 = vand.u32 %v496, 4294901760
  %1410 = vmatmul.mubr.f32.gmra.mxu0 %v1409
  %v1411 = vpop.f32.mrf.mxu0
  %v1412 = vadd.f32 %v1218, %v1411
  %v1413 = vpop.f32.mrf.mxu0
  %1414 = vmatprep.mubr.f32.mxu0 0.0
  %v1415 = vand.u32 %v499, 4294901760
  %1416 = vmatmul.mubr.f32.gmra.mxu0 %v1415
  %v1417 = vpop.f32.mrf.mxu0
  %v1418 = vadd.f32 %v1226, %v1417
  %v1419 = vpop.f32.mrf.mxu0
  %1420 = vmatprep.mubr.f32.mxu0 0.0
  %v1421 = vand.u32 %v502, 4294901760
  %1422 = vmatmul.mubr.f32.gmra.mxu0 %v1421
  %v1423 = vpop.f32.mrf.mxu0
  %v1424 = vadd.f32 %v1234, %v1423
  %v1425 = vpop.f32.mrf.mxu0
  %1426 = vmatprep.mubr.f32.mxu0 0.0
  %v1427 = vand.u32 %v505, 4294901760
  %1428 = vmatmul.mubr.f32.gmra.mxu0 %v1427
  %v1429 = vpop.f32.mrf.mxu0
  %v1430 = vadd.f32 %v1242, %v1429
  %v1431 = vpop.f32.mrf.mxu0
  %1432 = vmatprep.mubr.f32.mxu0 0.0
  %v1433 = vand.u32 %v508, 4294901760
  %1434 = vmatmul.mubr.f32.gmra.mxu0 %v1433
  %v1435 = vpop.f32.mrf.mxu0
  %v1436 = vadd.f32 %v1250, %v1435
  %v1437 = vpop.f32.mrf.mxu0
  %1438 = vmatprep.mubr.f32.mxu0 0.0
  %v1439 = vand.u32 %v511, 4294901760
  %1440 = vmatmul.mubr.f32.gmra.mxu0 %v1439
  %v1441 = vpop.f32.mrf.mxu0
  %v1442 = vadd.f32 %v1258, %v1441
  %v1443 = vpop.f32.mrf.mxu0
  %1444 = vmatprep.mubr.f32.mxu0 0.0
  %v1445 = vand.u32 %v514, 4294901760
  %1446 = vmatmul.mubr.f32.gmra.mxu0 %v1445
  %v1447 = vpop.f32.mrf.mxu0
  %v1448 = vadd.f32 %v1266, %v1447
  %v1449 = vpop.f32.mrf.mxu0
  %1450 = vmatprep.mubr.f32.mxu0 0.0
  %v1451 = vand.u32 %v517, 4294901760
  %1452 = vmatmul.mubr.f32.gmra.mxu0 %v1451
  %v1453 = vpop.f32.mrf.mxu0
  %v1454 = vadd.f32 %v1274, %v1453
  %v1455 = vpop.f32.mrf.mxu0
  %1456 = vmatprep.mubr.f32.mxu0 0.0
  %v1457 = vand.u32 %v520, 4294901760
  %1458 = vmatmul.mubr.f32.gmra.mxu0 %v1457
  %v1459 = vpop.f32.mrf.mxu0
  %v1460 = vadd.f32 %v1282, %v1459
  %v1461 = vpop.f32.mrf.mxu0
  %1462 = vmatprep.mubr.f32.mxu0 0.0
  %v1463 = vand.u32 %v523, 4294901760
  %1464 = vmatmul.mubr.f32.gmra.mxu0 %v1463
  %v1465 = vpop.f32.mrf.mxu0
  %v1466 = vadd.f32 %v1290, %v1465
  %v1467 = vpop.f32.mrf.mxu0
  %1468 = vmatprep.mubr.f32.mxu0 0.0
  %v1469 = vand.u32 %v526, 4294901760
  %1470 = vmatmul.mubr.f32.gmra.mxu0 %v1469
  %v1471 = vpop.f32.mrf.mxu0
  %v1472 = vadd.f32 %v1298, %v1471
  %v1473 = vpop.f32.mrf.mxu0
  %1474 = vmatprep.mubr.f32.mxu0 0.0
  %v1475 = vand.u32 %v529, 4294901760
  %1476 = vmatmul.mubr.f32.gmra.mxu0 %v1475
  %v1477 = vpop.f32.mrf.mxu0
  %v1478 = vadd.f32 %v1306, %v1477
  %v1479 = vpop.f32.mrf.mxu0
  %1480 = vmatprep.mubr.f32.mxu0 0.0
  %v1481 = vand.u32 %v532, 4294901760
  %1482 = vmatmul.mubr.f32.gmra.mxu0 %v1481
  %v1483 = vpop.f32.mrf.mxu0
  %v1484 = vadd.f32 %v1314, %v1483
  %v1485 = vpop.f32.mrf.mxu0
  %1486 = vdwg.mxu0
  %1487 = vmatprep.subr.mxu0 0.0
  %1488 = vmatpush1.msra.mxu0 0.0
  %1489 = vmatprep.subr.mxu0 0.0
  %1490 = vmatpush1.msra.mxu0 0.0
  %1491 = vmatprep.subr.mxu0 0.0
  %1492 = vmatpush1.msra.mxu0 0.0
  %1493 = vmatprep.subr.mxu0 0.0
  %1494 = vmatpush1.msra.mxu0 0.0
  %1495 = vmatprep.subr.mxu0 0.0
  %1496 = vmatpush1.msra.mxu0 0.0
  %1497 = vmatprep.subr.mxu0 0.0
  %1498 = vmatpush1.msra.mxu0 0.0
  %1499 = vmatprep.subr.mxu0 0.0
  %1500 = vmatpush1.msra.mxu0 0.0
  %1501 = vmatprep.subr.mxu0 0.0
  %1502 = vmatpush1.msra.mxu0 0.0
  %1503 = vmatprep.subr.mxu0 0.0
  %1504 = vmatpush1.msra.mxu0 0.0
  %1505 = vmatprep.subr.mxu0 0.0
  %1506 = vmatpush1.msra.mxu0 0.0
  %1507 = vmatprep.subr.mxu0 0.0
  %1508 = vmatpush1.msra.mxu0 0.0
  %1509 = vmatprep.subr.mxu0 0.0
  %1510 = vmatpush1.msra.mxu0 0.0
  %1511 = vmatprep.subr.mxu0 0.0
  %1512 = vmatpush1.msra.mxu0 0.0
  %1513 = vmatprep.subr.mxu0 0.0
  %v1514 = vand.u32 %v33, 4294901760
  %1515 = vmatpush1.msra.mxu0 %v1514
  %1516 = vmatprep.subr.mxu0 0.0
  %v1517 = vand.u32 %v32, 4294901760
  %1518 = vmatpush1.msra.mxu0 %v1517
  %1519 = vmatprep.subr.mxu0 0.0
  %v1520 = vand.u32 %v31, 4294901760
  %1521 = vmatpush1.msra.mxu0 %v1520
  %1522 = vmatprep.subr.mxu0 0.0
  %1523 = vmatpush2.msra.mxu0 0.0
  %1524 = vmatprep.subr.mxu0 0.0
  %1525 = vmatpush2.msra.mxu0 0.0
  %1526 = vmatprep.subr.mxu0 0.0
  %1527 = vmatpush2.msra.mxu0 0.0
  %1528 = vmatprep.subr.mxu0 0.0
  %1529 = vmatpush2.msra.mxu0 0.0
  %1530 = vmatprep.subr.mxu0 0.0
  %1531 = vmatpush2.msra.mxu0 0.0
  %1532 = vmatprep.subr.mxu0 0.0
  %1533 = vmatpush2.msra.mxu0 0.0
  %1534 = vmatprep.subr.mxu0 0.0
  %1535 = vmatpush2.msra.mxu0 0.0
  %1536 = vmatprep.subr.mxu0 0.0
  %1537 = vmatpush2.msra.mxu0 0.0
  %1538 = vmatprep.subr.mxu0 0.0
  %1539 = vmatpush2.msra.mxu0 0.0
  %1540 = vmatprep.subr.mxu0 0.0
  %1541 = vmatpush2.msra.mxu0 0.0
  %1542 = vmatprep.subr.mxu0 0.0
  %1543 = vmatpush2.msra.mxu0 0.0
  %1544 = vmatprep.subr.mxu0 0.0
  %1545 = vmatpush2.msra.mxu0 0.0
  %1546 = vmatprep.subr.mxu0 0.0
  %1547 = vmatpush2.msra.mxu0 0.0
  %1548 = vmatprep.subr.mxu0 0.0
  %1549 = vmatpush2.msra.mxu0 0.0
  %1550 = vmatprep.subr.mxu0 0.0
  %1551 = vmatpush2.msra.mxu0 0.0
  %1552 = vmatprep.subr.mxu0 0.0
  %1553 = vmatpush2.msra.mxu0 0.0
  %1554 = vmatprep.mubr.f32.mxu0 0.0
  %v1555 = vand.u32 %v487, 4294901760
  %1556 = vmatmul.mubr.f32.gmra.mxu0 %v1555
  %v1557 = vpop.f32.mrf.mxu0
  %v1558 = vadd.f32 %v1394, %v1557
  %v1559 = vpop.f32.mrf.mxu0
  %1560 = vmatprep.mubr.f32.mxu0 0.0
  %v1561 = vand.u32 %v490, 4294901760
  %1562 = vmatmul.mubr.f32.gmra.mxu0 %v1561
  %v1563 = vpop.f32.mrf.mxu0
  %v1564 = vadd.f32 %v1400, %v1563
  %v1565 = vpop.f32.mrf.mxu0
  %1566 = vmatprep.mubr.f32.mxu0 0.0
  %v1567 = vand.u32 %v493, 4294901760
  %1568 = vmatmul.mubr.f32.gmra.mxu0 %v1567
  %v1569 = vpop.f32.mrf.mxu0
  %v1570 = vadd.f32 %v1406, %v1569
  %v1571 = vpop.f32.mrf.mxu0
  %1572 = vmatprep.mubr.f32.mxu0 0.0
  %v1573 = vand.u32 %v496, 4294901760
  %1574 = vmatmul.mubr.f32.gmra.mxu0 %v1573
  %v1575 = vpop.f32.mrf.mxu0
  %v1576 = vadd.f32 %v1412, %v1575
  %v1577 = vpop.f32.mrf.mxu0
  %1578 = vmatprep.mubr.f32.mxu0 0.0
  %v1579 = vand.u32 %v499, 4294901760
  %1580 = vmatmul.mubr.f32.gmra.mxu0 %v1579
  %v1581 = vpop.f32.mrf.mxu0
  %v1582 = vadd.f32 %v1418, %v1581
  %v1583 = vpop.f32.mrf.mxu0
  %1584 = vmatprep.mubr.f32.mxu0 0.0
  %v1585 = vand.u32 %v502, 4294901760
  %1586 = vmatmul.mubr.f32.gmra.mxu0 %v1585
  %v1587 = vpop.f32.mrf.mxu0
  %v1588 = vadd.f32 %v1424, %v1587
  %v1589 = vpop.f32.mrf.mxu0
  %1590 = vmatprep.mubr.f32.mxu0 0.0
  %v1591 = vand.u32 %v505, 4294901760
  %1592 = vmatmul.mubr.f32.gmra.mxu0 %v1591
  %v1593 = vpop.f32.mrf.mxu0
  %v1594 = vadd.f32 %v1430, %v1593
  %v1595 = vpop.f32.mrf.mxu0
  %1596 = vmatprep.mubr.f32.mxu0 0.0
  %v1597 = vand.u32 %v508, 4294901760
  %1598 = vmatmul.mubr.f32.gmra.mxu0 %v1597
  %v1599 = vpop.f32.mrf.mxu0
  %v1600 = vadd.f32 %v1436, %v1599
  %v1601 = vpop.f32.mrf.mxu0
  %1602 = vmatprep.mubr.f32.mxu0 0.0
  %v1603 = vand.u32 %v511, 4294901760
  %1604 = vmatmul.mubr.f32.gmra.mxu0 %v1603
  %v1605 = vpop.f32.mrf.mxu0
  %v1606 = vadd.f32 %v1442, %v1605
  %v1607 = vpop.f32.mrf.mxu0
  %1608 = vmatprep.mubr.f32.mxu0 0.0
  %v1609 = vand.u32 %v514, 4294901760
  %1610 = vmatmul.mubr.f32.gmra.mxu0 %v1609
  %v1611 = vpop.f32.mrf.mxu0
  %v1612 = vadd.f32 %v1448, %v1611
  %v1613 = vpop.f32.mrf.mxu0
  %1614 = vmatprep.mubr.f32.mxu0 0.0
  %v1615 = vand.u32 %v517, 4294901760
  %1616 = vmatmul.mubr.f32.gmra.mxu0 %v1615
  %v1617 = vpop.f32.mrf.mxu0
  %v1618 = vadd.f32 %v1454, %v1617
  %v1619 = vpop.f32.mrf.mxu0
  %1620 = vmatprep.mubr.f32.mxu0 0.0
  %v1621 = vand.u32 %v520, 4294901760
  %1622 = vmatmul.mubr.f32.gmra.mxu0 %v1621
  %v1623 = vpop.f32.mrf.mxu0
  %v1624 = vadd.f32 %v1460, %v1623
  %v1625 = vpop.f32.mrf.mxu0
  %1626 = vmatprep.mubr.f32.mxu0 0.0
  %v1627 = vand.u32 %v523, 4294901760
  %1628 = vmatmul.mubr.f32.gmra.mxu0 %v1627
  %v1629 = vpop.f32.mrf.mxu0
  %v1630 = vadd.f32 %v1466, %v1629
  %v1631 = vpop.f32.mrf.mxu0
  %1632 = vmatprep.mubr.f32.mxu0 0.0
  %v1633 = vand.u32 %v526, 4294901760
  %1634 = vmatmul.mubr.f32.gmra.mxu0 %v1633
  %v1635 = vpop.f32.mrf.mxu0
  %v1636 = vadd.f32 %v1472, %v1635
  %v1637 = vpop.f32.mrf.mxu0
  %1638 = vmatprep.mubr.f32.mxu0 0.0
  %v1639 = vand.u32 %v529, 4294901760
  %1640 = vmatmul.mubr.f32.gmra.mxu0 %v1639
  %v1641 = vpop.f32.mrf.mxu0
  %v1642 = vadd.f32 %v1478, %v1641
  %v1643 = vpop.f32.mrf.mxu0
  %1644 = vmatprep.mubr.f32.mxu0 0.0
  %v1645 = vand.u32 %v532, 4294901760
  %1646 = vmatmul.mubr.f32.gmra.mxu0 %v1645
  %v1647 = vpop.f32.mrf.mxu0
  %v1648 = vadd.f32 %v1484, %v1647
  %v1649 = vpop.f32.mrf.mxu0
  %1650 = vdwg.mxu0
  %v1651 = vmul.f32 %v31, %v31
  %v1652 = vmul.f32 %v32, %v32
  %v1653 = vmul.f32 %v33, %v33
  %1654 = vmatprep.subr.mxu0 0.0
  %1655 = vmatpush1.msra.mxu0 0.0
  %1656 = vmatprep.subr.mxu0 0.0
  %1657 = vmatpush1.msra.mxu0 0.0
  %1658 = vmatprep.subr.mxu0 0.0
  %1659 = vmatpush1.msra.mxu0 0.0
  %1660 = vmatprep.subr.mxu0 0.0
  %1661 = vmatpush1.msra.mxu0 0.0
  %1662 = vmatprep.subr.mxu0 0.0
  %1663 = vmatpush1.msra.mxu0 0.0
  %1664 = vmatprep.subr.mxu0 0.0
  %1665 = vmatpush1.msra.mxu0 0.0
  %1666 = vmatprep.subr.mxu0 0.0
  %1667 = vmatpush1.msra.mxu0 0.0
  %1668 = vmatprep.subr.mxu0 0.0
  %1669 = vmatpush1.msra.mxu0 0.0
  %1670 = vmatprep.subr.mxu0 0.0
  %1671 = vmatpush1.msra.mxu0 0.0
  %1672 = vmatprep.subr.mxu0 0.0
  %1673 = vmatpush1.msra.mxu0 0.0
  %1674 = vmatprep.subr.mxu0 0.0
  %1675 = vmatpush1.msra.mxu0 0.0
  %1676 = vmatprep.subr.mxu0 0.0
  %1677 = vmatpush1.msra.mxu0 0.0
  %1678 = vmatprep.subr.mxu0 0.0
  %1679 = vmatpush1.msra.mxu0 0.0
  %1680 = vmatprep.subr.mxu0 0.0
  %v1681 = vand.u32 %v1653, 4294901760
  %1682 = vmatpush1.msra.mxu0 %v1681
  %1683 = vmatprep.subr.mxu0 0.0
  %v1684 = vand.u32 %v1652, 4294901760
  %1685 = vmatpush1.msra.mxu0 %v1684
  %1686 = vmatprep.subr.mxu0 0.0
  %v1687 = vand.u32 %v1651, 4294901760
  %1688 = vmatpush1.msra.mxu0 %v1687
  %1689 = vmatprep.subr.mxu0 0.0
  %1690 = vmatpush2.msra.mxu0 0.0
  %1691 = vmatprep.subr.mxu0 0.0
  %1692 = vmatpush2.msra.mxu0 0.0
  %1693 = vmatprep.subr.mxu0 0.0
  %1694 = vmatpush2.msra.mxu0 0.0
  %1695 = vmatprep.subr.mxu0 0.0
  %1696 = vmatpush2.msra.mxu0 0.0
  %1697 = vmatprep.subr.mxu0 0.0
  %1698 = vmatpush2.msra.mxu0 0.0
  %1699 = vmatprep.subr.mxu0 0.0
  %1700 = vmatpush2.msra.mxu0 0.0
  %1701 = vmatprep.subr.mxu0 0.0
  %1702 = vmatpush2.msra.mxu0 0.0
  %1703 = vmatprep.subr.mxu0 0.0
  %1704 = vmatpush2.msra.mxu0 0.0
  %1705 = vmatprep.subr.mxu0 0.0
  %1706 = vmatpush2.msra.mxu0 0.0
  %1707 = vmatprep.subr.mxu0 0.0
  %1708 = vmatpush2.msra.mxu0 0.0
  %1709 = vmatprep.subr.mxu0 0.0
  %1710 = vmatpush2.msra.mxu0 0.0
  %1711 = vmatprep.subr.mxu0 0.0
  %1712 = vmatpush2.msra.mxu0 0.0
  %1713 = vmatprep.subr.mxu0 0.0
  %1714 = vmatpush2.msra.mxu0 0.0
  %1715 = vmatprep.subr.mxu0 0.0
  %1716 = vmatpush2.msra.mxu0 0.0
  %1717 = vmatprep.subr.mxu0 0.0
  %1718 = vmatpush2.msra.mxu0 0.0
  %1719 = vmatprep.subr.mxu0 0.0
  %1720 = vmatpush2.msra.mxu0 0.0
  %1721 = vmatprep.mubr.f32.mxu0 0.0
  %v1722 = vand.u32 %v487, 4294901760
  %v1723 = vsub.f32 %v487, %v1722
  %v1724 = vand.u32 %v1723, 4294901760
  %v1725 = vsub.f32 %v1723, %v1724
  %v1726 = vand.u32 %v1725, 4294901760
  %1727 = vmatmul.mubr.f32.gmra.mxu0 %v1726
  %v1728 = vpop.f32.mrf.mxu0
  %v1729 = vadd.f32 0.0, %v1728
  %v1730 = vpop.f32.mrf.mxu0
  %1731 = vmatprep.mubr.f32.mxu0 0.0
  %v1732 = vand.u32 %v490, 4294901760
  %v1733 = vsub.f32 %v490, %v1732
  %v1734 = vand.u32 %v1733, 4294901760
  %v1735 = vsub.f32 %v1733, %v1734
  %v1736 = vand.u32 %v1735, 4294901760
  %1737 = vmatmul.mubr.f32.gmra.mxu0 %v1736
  %v1738 = vpop.f32.mrf.mxu0
  %v1739 = vadd.f32 0.0, %v1738
  %v1740 = vpop.f32.mrf.mxu0
  %1741 = vmatprep.mubr.f32.mxu0 0.0
  %v1742 = vand.u32 %v493, 4294901760
  %v1743 = vsub.f32 %v493, %v1742
  %v1744 = vand.u32 %v1743, 4294901760
  %v1745 = vsub.f32 %v1743, %v1744
  %v1746 = vand.u32 %v1745, 4294901760
  %1747 = vmatmul.mubr.f32.gmra.mxu0 %v1746
  %v1748 = vpop.f32.mrf.mxu0
  %v1749 = vadd.f32 0.0, %v1748
  %v1750 = vpop.f32.mrf.mxu0
  %1751 = vmatprep.mubr.f32.mxu0 0.0
  %v1752 = vand.u32 %v496, 4294901760
  %v1753 = vsub.f32 %v496, %v1752
  %v1754 = vand.u32 %v1753, 4294901760
  %v1755 = vsub.f32 %v1753, %v1754
  %v1756 = vand.u32 %v1755, 4294901760
  %1757 = vmatmul.mubr.f32.gmra.mxu0 %v1756
  %v1758 = vpop.f32.mrf.mxu0
  %v1759 = vadd.f32 0.0, %v1758
  %v1760 = vpop.f32.mrf.mxu0
  %1761 = vmatprep.mubr.f32.mxu0 0.0
  %v1762 = vand.u32 %v499, 4294901760
  %v1763 = vsub.f32 %v499, %v1762
  %v1764 = vand.u32 %v1763, 4294901760
  %v1765 = vsub.f32 %v1763, %v1764
  %v1766 = vand.u32 %v1765, 4294901760
  %1767 = vmatmul.mubr.f32.gmra.mxu0 %v1766
  %v1768 = vpop.f32.mrf.mxu0
  %v1769 = vadd.f32 0.0, %v1768
  %v1770 = vpop.f32.mrf.mxu0
  %1771 = vmatprep.mubr.f32.mxu0 0.0
  %v1772 = vand.u32 %v502, 4294901760
  %v1773 = vsub.f32 %v502, %v1772
  %v1774 = vand.u32 %v1773, 4294901760
  %v1775 = vsub.f32 %v1773, %v1774
  %v1776 = vand.u32 %v1775, 4294901760
  %1777 = vmatmul.mubr.f32.gmra.mxu0 %v1776
  %v1778 = vpop.f32.mrf.mxu0
  %v1779 = vadd.f32 0.0, %v1778
  %v1780 = vpop.f32.mrf.mxu0
  %1781 = vmatprep.mubr.f32.mxu0 0.0
  %v1782 = vand.u32 %v505, 4294901760
  %v1783 = vsub.f32 %v505, %v1782
  %v1784 = vand.u32 %v1783, 4294901760
  %v1785 = vsub.f32 %v1783, %v1784
  %v1786 = vand.u32 %v1785, 4294901760
  %1787 = vmatmul.mubr.f32.gmra.mxu0 %v1786
  %v1788 = vpop.f32.mrf.mxu0
  %v1789 = vadd.f32 0.0, %v1788
  %v1790 = vpop.f32.mrf.mxu0
  %1791 = vmatprep.mubr.f32.mxu0 0.0
  %v1792 = vand.u32 %v508, 4294901760
  %v1793 = vsub.f32 %v508, %v1792
  %v1794 = vand.u32 %v1793, 4294901760
  %v1795 = vsub.f32 %v1793, %v1794
  %v1796 = vand.u32 %v1795, 4294901760
  %1797 = vmatmul.mubr.f32.gmra.mxu0 %v1796
  %v1798 = vpop.f32.mrf.mxu0
  %v1799 = vadd.f32 0.0, %v1798
  %v1800 = vpop.f32.mrf.mxu0
  %1801 = vmatprep.mubr.f32.mxu0 0.0
  %v1802 = vand.u32 %v511, 4294901760
  %v1803 = vsub.f32 %v511, %v1802
  %v1804 = vand.u32 %v1803, 4294901760
  %v1805 = vsub.f32 %v1803, %v1804
  %v1806 = vand.u32 %v1805, 4294901760
  %1807 = vmatmul.mubr.f32.gmra.mxu0 %v1806
  %v1808 = vpop.f32.mrf.mxu0
  %v1809 = vadd.f32 0.0, %v1808
  %v1810 = vpop.f32.mrf.mxu0
  %1811 = vmatprep.mubr.f32.mxu0 0.0
  %v1812 = vand.u32 %v514, 4294901760
  %v1813 = vsub.f32 %v514, %v1812
  %v1814 = vand.u32 %v1813, 4294901760
  %v1815 = vsub.f32 %v1813, %v1814
  %v1816 = vand.u32 %v1815, 4294901760
  %1817 = vmatmul.mubr.f32.gmra.mxu0 %v1816
  %v1818 = vpop.f32.mrf.mxu0
  %v1819 = vadd.f32 0.0, %v1818
  %v1820 = vpop.f32.mrf.mxu0
  %1821 = vmatprep.mubr.f32.mxu0 0.0
  %v1822 = vand.u32 %v517, 4294901760
  %v1823 = vsub.f32 %v517, %v1822
  %v1824 = vand.u32 %v1823, 4294901760
  %v1825 = vsub.f32 %v1823, %v1824
  %v1826 = vand.u32 %v1825, 4294901760
  %1827 = vmatmul.mubr.f32.gmra.mxu0 %v1826
  %v1828 = vpop.f32.mrf.mxu0
  %v1829 = vadd.f32 0.0, %v1828
  %v1830 = vpop.f32.mrf.mxu0
  %1831 = vmatprep.mubr.f32.mxu0 0.0
  %v1832 = vand.u32 %v520, 4294901760
  %v1833 = vsub.f32 %v520, %v1832
  %v1834 = vand.u32 %v1833, 4294901760
  %v1835 = vsub.f32 %v1833, %v1834
  %v1836 = vand.u32 %v1835, 4294901760
  %1837 = vmatmul.mubr.f32.gmra.mxu0 %v1836
  %v1838 = vpop.f32.mrf.mxu0
  %v1839 = vadd.f32 0.0, %v1838
  %v1840 = vpop.f32.mrf.mxu0
  %1841 = vmatprep.mubr.f32.mxu0 0.0
  %v1842 = vand.u32 %v523, 4294901760
  %v1843 = vsub.f32 %v523, %v1842
  %v1844 = vand.u32 %v1843, 4294901760
  %v1845 = vsub.f32 %v1843, %v1844
  %v1846 = vand.u32 %v1845, 4294901760
  %1847 = vmatmul.mubr.f32.gmra.mxu0 %v1846
  %v1848 = vpop.f32.mrf.mxu0
  %v1849 = vadd.f32 0.0, %v1848
  %v1850 = vpop.f32.mrf.mxu0
  %1851 = vmatprep.mubr.f32.mxu0 0.0
  %v1852 = vand.u32 %v526, 4294901760
  %v1853 = vsub.f32 %v526, %v1852
  %v1854 = vand.u32 %v1853, 4294901760
  %v1855 = vsub.f32 %v1853, %v1854
  %v1856 = vand.u32 %v1855, 4294901760
  %1857 = vmatmul.mubr.f32.gmra.mxu0 %v1856
  %v1858 = vpop.f32.mrf.mxu0
  %v1859 = vadd.f32 0.0, %v1858
  %v1860 = vpop.f32.mrf.mxu0
  %1861 = vmatprep.mubr.f32.mxu0 0.0
  %v1862 = vand.u32 %v529, 4294901760
  %v1863 = vsub.f32 %v529, %v1862
  %v1864 = vand.u32 %v1863, 4294901760
  %v1865 = vsub.f32 %v1863, %v1864
  %v1866 = vand.u32 %v1865, 4294901760
  %1867 = vmatmul.mubr.f32.gmra.mxu0 %v1866
  %v1868 = vpop.f32.mrf.mxu0
  %v1869 = vadd.f32 0.0, %v1868
  %v1870 = vpop.f32.mrf.mxu0
  %1871 = vmatprep.mubr.f32.mxu0 0.0
  %v1872 = vand.u32 %v532, 4294901760
  %v1873 = vsub.f32 %v532, %v1872
  %v1874 = vand.u32 %v1873, 4294901760
  %v1875 = vsub.f32 %v1873, %v1874
  %v1876 = vand.u32 %v1875, 4294901760
  %1877 = vmatmul.mubr.f32.gmra.mxu0 %v1876
  %v1878 = vpop.f32.mrf.mxu0
  %v1879 = vadd.f32 0.0, %v1878
  %v1880 = vpop.f32.mrf.mxu0
  %1881 = vdwg.mxu0
  %1882 = vmatprep.subr.mxu0 0.0
  %1883 = vmatpush1.msra.mxu0 0.0
  %1884 = vmatprep.subr.mxu0 0.0
  %1885 = vmatpush1.msra.mxu0 0.0
  %1886 = vmatprep.subr.mxu0 0.0
  %1887 = vmatpush1.msra.mxu0 0.0
  %1888 = vmatprep.subr.mxu0 0.0
  %1889 = vmatpush1.msra.mxu0 0.0
  %1890 = vmatprep.subr.mxu0 0.0
  %1891 = vmatpush1.msra.mxu0 0.0
  %1892 = vmatprep.subr.mxu0 0.0
  %1893 = vmatpush1.msra.mxu0 0.0
  %1894 = vmatprep.subr.mxu0 0.0
  %1895 = vmatpush1.msra.mxu0 0.0
  %1896 = vmatprep.subr.mxu0 0.0
  %1897 = vmatpush1.msra.mxu0 0.0
  %1898 = vmatprep.subr.mxu0 0.0
  %1899 = vmatpush1.msra.mxu0 0.0
  %1900 = vmatprep.subr.mxu0 0.0
  %1901 = vmatpush1.msra.mxu0 0.0
  %1902 = vmatprep.subr.mxu0 0.0
  %1903 = vmatpush1.msra.mxu0 0.0
  %1904 = vmatprep.subr.mxu0 0.0
  %1905 = vmatpush1.msra.mxu0 0.0
  %1906 = vmatprep.subr.mxu0 0.0
  %1907 = vmatpush1.msra.mxu0 0.0
  %1908 = vmatprep.subr.mxu0 0.0
  %v1909 = vand.u32 %v1653, 4294901760
  %v1910 = vsub.f32 %v1653, %v1909
  %v1911 = vand.u32 %v1910, 4294901760
  %v1912 = vsub.f32 %v1910, %v1911
  %v1913 = vand.u32 %v1912, 4294901760
  %1914 = vmatpush1.msra.mxu0 %v1913
  %1915 = vmatprep.subr.mxu0 0.0
  %v1916 = vand.u32 %v1652, 4294901760
  %v1917 = vsub.f32 %v1652, %v1916
  %v1918 = vand.u32 %v1917, 4294901760
  %v1919 = vsub.f32 %v1917, %v1918
  %v1920 = vand.u32 %v1919, 4294901760
  %1921 = vmatpush1.msra.mxu0 %v1920
  %1922 = vmatprep.subr.mxu0 0.0
  %v1923 = vand.u32 %v1651, 4294901760
  %v1924 = vsub.f32 %v1651, %v1923
  %v1925 = vand.u32 %v1924, 4294901760
  %v1926 = vsub.f32 %v1924, %v1925
  %v1927 = vand.u32 %v1926, 4294901760
  %1928 = vmatpush1.msra.mxu0 %v1927
  %1929 = vmatprep.subr.mxu0 0.0
  %1930 = vmatpush2.msra.mxu0 0.0
  %1931 = vmatprep.subr.mxu0 0.0
  %1932 = vmatpush2.msra.mxu0 0.0
  %1933 = vmatprep.subr.mxu0 0.0
  %1934 = vmatpush2.msra.mxu0 0.0
  %1935 = vmatprep.subr.mxu0 0.0
  %1936 = vmatpush2.msra.mxu0 0.0
  %1937 = vmatprep.subr.mxu0 0.0
  %1938 = vmatpush2.msra.mxu0 0.0
  %1939 = vmatprep.subr.mxu0 0.0
  %1940 = vmatpush2.msra.mxu0 0.0
  %1941 = vmatprep.subr.mxu0 0.0
  %1942 = vmatpush2.msra.mxu0 0.0
  %1943 = vmatprep.subr.mxu0 0.0
  %1944 = vmatpush2.msra.mxu0 0.0
  %1945 = vmatprep.subr.mxu0 0.0
  %1946 = vmatpush2.msra.mxu0 0.0
  %1947 = vmatprep.subr.mxu0 0.0
  %1948 = vmatpush2.msra.mxu0 0.0
  %1949 = vmatprep.subr.mxu0 0.0
  %1950 = vmatpush2.msra.mxu0 0.0
  %1951 = vmatprep.subr.mxu0 0.0
  %1952 = vmatpush2.msra.mxu0 0.0
  %1953 = vmatprep.subr.mxu0 0.0
  %1954 = vmatpush2.msra.mxu0 0.0
  %1955 = vmatprep.subr.mxu0 0.0
  %1956 = vmatpush2.msra.mxu0 0.0
  %1957 = vmatprep.subr.mxu0 0.0
  %1958 = vmatpush2.msra.mxu0 0.0
  %1959 = vmatprep.subr.mxu0 0.0
  %1960 = vmatpush2.msra.mxu0 0.0
  %1961 = vmatprep.mubr.f32.mxu0 0.0
  %v1962 = vand.u32 %v487, 4294901760
  %1963 = vmatmul.mubr.f32.gmra.mxu0 %v1962
  %v1964 = vpop.f32.mrf.mxu0
  %v1965 = vadd.f32 %v1729, %v1964
  %v1966 = vpop.f32.mrf.mxu0
  %1967 = vmatprep.mubr.f32.mxu0 0.0
  %v1968 = vand.u32 %v490, 4294901760
  %1969 = vmatmul.mubr.f32.gmra.mxu0 %v1968
  %v1970 = vpop.f32.mrf.mxu0
  %v1971 = vadd.f32 %v1739, %v1970
  %v1972 = vpop.f32.mrf.mxu0
  %1973 = vmatprep.mubr.f32.mxu0 0.0
  %v1974 = vand.u32 %v493, 4294901760
  %1975 = vmatmul.mubr.f32.gmra.mxu0 %v1974
  %v1976 = vpop.f32.mrf.mxu0
  %v1977 = vadd.f32 %v1749, %v1976
  %v1978 = vpop.f32.mrf.mxu0
  %1979 = vmatprep.mubr.f32.mxu0 0.0
  %v1980 = vand.u32 %v496, 4294901760
  %1981 = vmatmul.mubr.f32.gmra.mxu0 %v1980
  %v1982 = vpop.f32.mrf.mxu0
  %v1983 = vadd.f32 %v1759, %v1982
  %v1984 = vpop.f32.mrf.mxu0
  %1985 = vmatprep.mubr.f32.mxu0 0.0
  %v1986 = vand.u32 %v499, 4294901760
  %1987 = vmatmul.mubr.f32.gmra.mxu0 %v1986
  %v1988 = vpop.f32.mrf.mxu0
  %v1989 = vadd.f32 %v1769, %v1988
  %v1990 = vpop.f32.mrf.mxu0
  %1991 = vmatprep.mubr.f32.mxu0 0.0
  %v1992 = vand.u32 %v502, 4294901760
  %1993 = vmatmul.mubr.f32.gmra.mxu0 %v1992
  %v1994 = vpop.f32.mrf.mxu0
  %v1995 = vadd.f32 %v1779, %v1994
  %v1996 = vpop.f32.mrf.mxu0
  %1997 = vmatprep.mubr.f32.mxu0 0.0
  %v1998 = vand.u32 %v505, 4294901760
  %1999 = vmatmul.mubr.f32.gmra.mxu0 %v1998
  %v2000 = vpop.f32.mrf.mxu0
  %v2001 = vadd.f32 %v1789, %v2000
  %v2002 = vpop.f32.mrf.mxu0
  %2003 = vmatprep.mubr.f32.mxu0 0.0
  %v2004 = vand.u32 %v508, 4294901760
  %2005 = vmatmul.mubr.f32.gmra.mxu0 %v2004
  %v2006 = vpop.f32.mrf.mxu0
  %v2007 = vadd.f32 %v1799, %v2006
  %v2008 = vpop.f32.mrf.mxu0
  %2009 = vmatprep.mubr.f32.mxu0 0.0
  %v2010 = vand.u32 %v511, 4294901760
  %2011 = vmatmul.mubr.f32.gmra.mxu0 %v2010
  %v2012 = vpop.f32.mrf.mxu0
  %v2013 = vadd.f32 %v1809, %v2012
  %v2014 = vpop.f32.mrf.mxu0
  %2015 = vmatprep.mubr.f32.mxu0 0.0
  %v2016 = vand.u32 %v514, 4294901760
  %2017 = vmatmul.mubr.f32.gmra.mxu0 %v2016
  %v2018 = vpop.f32.mrf.mxu0
  %v2019 = vadd.f32 %v1819, %v2018
  %v2020 = vpop.f32.mrf.mxu0
  %2021 = vmatprep.mubr.f32.mxu0 0.0
  %v2022 = vand.u32 %v517, 4294901760
  %2023 = vmatmul.mubr.f32.gmra.mxu0 %v2022
  %v2024 = vpop.f32.mrf.mxu0
  %v2025 = vadd.f32 %v1829, %v2024
  %v2026 = vpop.f32.mrf.mxu0
  %2027 = vmatprep.mubr.f32.mxu0 0.0
  %v2028 = vand.u32 %v520, 4294901760
  %2029 = vmatmul.mubr.f32.gmra.mxu0 %v2028
  %v2030 = vpop.f32.mrf.mxu0
  %v2031 = vadd.f32 %v1839, %v2030
  %v2032 = vpop.f32.mrf.mxu0
  %2033 = vmatprep.mubr.f32.mxu0 0.0
  %v2034 = vand.u32 %v523, 4294901760
  %2035 = vmatmul.mubr.f32.gmra.mxu0 %v2034
  %v2036 = vpop.f32.mrf.mxu0
  %v2037 = vadd.f32 %v1849, %v2036
  %v2038 = vpop.f32.mrf.mxu0
  %2039 = vmatprep.mubr.f32.mxu0 0.0
  %v2040 = vand.u32 %v526, 4294901760
  %2041 = vmatmul.mubr.f32.gmra.mxu0 %v2040
  %v2042 = vpop.f32.mrf.mxu0
  %v2043 = vadd.f32 %v1859, %v2042
  %v2044 = vpop.f32.mrf.mxu0
  %2045 = vmatprep.mubr.f32.mxu0 0.0
  %v2046 = vand.u32 %v529, 4294901760
  %2047 = vmatmul.mubr.f32.gmra.mxu0 %v2046
  %v2048 = vpop.f32.mrf.mxu0
  %v2049 = vadd.f32 %v1869, %v2048
  %v2050 = vpop.f32.mrf.mxu0
  %2051 = vmatprep.mubr.f32.mxu0 0.0
  %v2052 = vand.u32 %v532, 4294901760
  %2053 = vmatmul.mubr.f32.gmra.mxu0 %v2052
  %v2054 = vpop.f32.mrf.mxu0
  %v2055 = vadd.f32 %v1879, %v2054
  %v2056 = vpop.f32.mrf.mxu0
  %2057 = vdwg.mxu0
  %2058 = vmatprep.subr.mxu0 0.0
  %2059 = vmatpush1.msra.mxu0 0.0
  %2060 = vmatprep.subr.mxu0 0.0
  %2061 = vmatpush1.msra.mxu0 0.0
  %2062 = vmatprep.subr.mxu0 0.0
  %2063 = vmatpush1.msra.mxu0 0.0
  %2064 = vmatprep.subr.mxu0 0.0
  %2065 = vmatpush1.msra.mxu0 0.0
  %2066 = vmatprep.subr.mxu0 0.0
  %2067 = vmatpush1.msra.mxu0 0.0
  %2068 = vmatprep.subr.mxu0 0.0
  %2069 = vmatpush1.msra.mxu0 0.0
  %2070 = vmatprep.subr.mxu0 0.0
  %2071 = vmatpush1.msra.mxu0 0.0
  %2072 = vmatprep.subr.mxu0 0.0
  %2073 = vmatpush1.msra.mxu0 0.0
  %2074 = vmatprep.subr.mxu0 0.0
  %2075 = vmatpush1.msra.mxu0 0.0
  %2076 = vmatprep.subr.mxu0 0.0
  %2077 = vmatpush1.msra.mxu0 0.0
  %2078 = vmatprep.subr.mxu0 0.0
  %2079 = vmatpush1.msra.mxu0 0.0
  %2080 = vmatprep.subr.mxu0 0.0
  %2081 = vmatpush1.msra.mxu0 0.0
  %2082 = vmatprep.subr.mxu0 0.0
  %2083 = vmatpush1.msra.mxu0 0.0
  %2084 = vmatprep.subr.mxu0 0.0
  %v2085 = vand.u32 %v1653, 4294901760
  %v2086 = vsub.f32 %v1653, %v2085
  %2087 = vmatpush1.msra.mxu0 %v2086
  %2088 = vmatprep.subr.mxu0 0.0
  %v2089 = vand.u32 %v1652, 4294901760
  %v2090 = vsub.f32 %v1652, %v2089
  %2091 = vmatpush1.msra.mxu0 %v2090
  %2092 = vmatprep.subr.mxu0 0.0
  %v2093 = vand.u32 %v1651, 4294901760
  %v2094 = vsub.f32 %v1651, %v2093
  %2095 = vmatpush1.msra.mxu0 %v2094
  %2096 = vmatprep.subr.mxu0 0.0
  %2097 = vmatpush2.msra.mxu0 0.0
  %2098 = vmatprep.subr.mxu0 0.0
  %2099 = vmatpush2.msra.mxu0 0.0
  %2100 = vmatprep.subr.mxu0 0.0
  %2101 = vmatpush2.msra.mxu0 0.0
  %2102 = vmatprep.subr.mxu0 0.0
  %2103 = vmatpush2.msra.mxu0 0.0
  %2104 = vmatprep.subr.mxu0 0.0
  %2105 = vmatpush2.msra.mxu0 0.0
  %2106 = vmatprep.subr.mxu0 0.0
  %2107 = vmatpush2.msra.mxu0 0.0
  %2108 = vmatprep.subr.mxu0 0.0
  %2109 = vmatpush2.msra.mxu0 0.0
  %2110 = vmatprep.subr.mxu0 0.0
  %2111 = vmatpush2.msra.mxu0 0.0
  %2112 = vmatprep.subr.mxu0 0.0
  %2113 = vmatpush2.msra.mxu0 0.0
  %2114 = vmatprep.subr.mxu0 0.0
  %2115 = vmatpush2.msra.mxu0 0.0
  %2116 = vmatprep.subr.mxu0 0.0
  %2117 = vmatpush2.msra.mxu0 0.0
  %2118 = vmatprep.subr.mxu0 0.0
  %2119 = vmatpush2.msra.mxu0 0.0
  %2120 = vmatprep.subr.mxu0 0.0
  %2121 = vmatpush2.msra.mxu0 0.0
  %2122 = vmatprep.subr.mxu0 0.0
  %2123 = vmatpush2.msra.mxu0 0.0
  %2124 = vmatprep.subr.mxu0 0.0
  %2125 = vmatpush2.msra.mxu0 0.0
  %2126 = vmatprep.subr.mxu0 0.0
  %2127 = vmatpush2.msra.mxu0 0.0
  %2128 = vmatprep.mubr.f32.mxu0 0.0
  %v2129 = vand.u32 %v487, 4294901760
  %v2130 = vsub.f32 %v487, %v2129
  %2131 = vmatmul.mubr.f32.gmra.mxu0 %v2130
  %v2132 = vpop.f32.mrf.mxu0
  %v2133 = vadd.f32 %v1965, %v2132
  %v2134 = vpop.f32.mrf.mxu0
  %2135 = vmatprep.mubr.f32.mxu0 0.0
  %v2136 = vand.u32 %v490, 4294901760
  %v2137 = vsub.f32 %v490, %v2136
  %2138 = vmatmul.mubr.f32.gmra.mxu0 %v2137
  %v2139 = vpop.f32.mrf.mxu0
  %v2140 = vadd.f32 %v1971, %v2139
  %v2141 = vpop.f32.mrf.mxu0
  %2142 = vmatprep.mubr.f32.mxu0 0.0
  %v2143 = vand.u32 %v493, 4294901760
  %v2144 = vsub.f32 %v493, %v2143
  %2145 = vmatmul.mubr.f32.gmra.mxu0 %v2144
  %v2146 = vpop.f32.mrf.mxu0
  %v2147 = vadd.f32 %v1977, %v2146
  %v2148 = vpop.f32.mrf.mxu0
  %2149 = vmatprep.mubr.f32.mxu0 0.0
  %v2150 = vand.u32 %v496, 4294901760
  %v2151 = vsub.f32 %v496, %v2150
  %2152 = vmatmul.mubr.f32.gmra.mxu0 %v2151
  %v2153 = vpop.f32.mrf.mxu0
  %v2154 = vadd.f32 %v1983, %v2153
  %v2155 = vpop.f32.mrf.mxu0
  %2156 = vmatprep.mubr.f32.mxu0 0.0
  %v2157 = vand.u32 %v499, 4294901760
  %v2158 = vsub.f32 %v499, %v2157
  %2159 = vmatmul.mubr.f32.gmra.mxu0 %v2158
  %v2160 = vpop.f32.mrf.mxu0
  %v2161 = vadd.f32 %v1989, %v2160
  %v2162 = vpop.f32.mrf.mxu0
  %2163 = vmatprep.mubr.f32.mxu0 0.0
  %v2164 = vand.u32 %v502, 4294901760
  %v2165 = vsub.f32 %v502, %v2164
  %2166 = vmatmul.mubr.f32.gmra.mxu0 %v2165
  %v2167 = vpop.f32.mrf.mxu0
  %v2168 = vadd.f32 %v1995, %v2167
  %v2169 = vpop.f32.mrf.mxu0
  %2170 = vmatprep.mubr.f32.mxu0 0.0
  %v2171 = vand.u32 %v505, 4294901760
  %v2172 = vsub.f32 %v505, %v2171
  %2173 = vmatmul.mubr.f32.gmra.mxu0 %v2172
  %v2174 = vpop.f32.mrf.mxu0
  %v2175 = vadd.f32 %v2001, %v2174
  %v2176 = vpop.f32.mrf.mxu0
  %2177 = vmatprep.mubr.f32.mxu0 0.0
  %v2178 = vand.u32 %v508, 4294901760
  %v2179 = vsub.f32 %v508, %v2178
  %2180 = vmatmul.mubr.f32.gmra.mxu0 %v2179
  %v2181 = vpop.f32.mrf.mxu0
  %v2182 = vadd.f32 %v2007, %v2181
  %v2183 = vpop.f32.mrf.mxu0
  %2184 = vmatprep.mubr.f32.mxu0 0.0
  %v2185 = vand.u32 %v511, 4294901760
  %v2186 = vsub.f32 %v511, %v2185
  %2187 = vmatmul.mubr.f32.gmra.mxu0 %v2186
  %v2188 = vpop.f32.mrf.mxu0
  %v2189 = vadd.f32 %v2013, %v2188
  %v2190 = vpop.f32.mrf.mxu0
  %2191 = vmatprep.mubr.f32.mxu0 0.0
  %v2192 = vand.u32 %v514, 4294901760
  %v2193 = vsub.f32 %v514, %v2192
  %2194 = vmatmul.mubr.f32.gmra.mxu0 %v2193
  %v2195 = vpop.f32.mrf.mxu0
  %v2196 = vadd.f32 %v2019, %v2195
  %v2197 = vpop.f32.mrf.mxu0
  %2198 = vmatprep.mubr.f32.mxu0 0.0
  %v2199 = vand.u32 %v517, 4294901760
  %v2200 = vsub.f32 %v517, %v2199
  %2201 = vmatmul.mubr.f32.gmra.mxu0 %v2200
  %v2202 = vpop.f32.mrf.mxu0
  %v2203 = vadd.f32 %v2025, %v2202
  %v2204 = vpop.f32.mrf.mxu0
  %2205 = vmatprep.mubr.f32.mxu0 0.0
  %v2206 = vand.u32 %v520, 4294901760
  %v2207 = vsub.f32 %v520, %v2206
  %2208 = vmatmul.mubr.f32.gmra.mxu0 %v2207
  %v2209 = vpop.f32.mrf.mxu0
  %v2210 = vadd.f32 %v2031, %v2209
  %v2211 = vpop.f32.mrf.mxu0
  %2212 = vmatprep.mubr.f32.mxu0 0.0
  %v2213 = vand.u32 %v523, 4294901760
  %v2214 = vsub.f32 %v523, %v2213
  %2215 = vmatmul.mubr.f32.gmra.mxu0 %v2214
  %v2216 = vpop.f32.mrf.mxu0
  %v2217 = vadd.f32 %v2037, %v2216
  %v2218 = vpop.f32.mrf.mxu0
  %2219 = vmatprep.mubr.f32.mxu0 0.0
  %v2220 = vand.u32 %v526, 4294901760
  %v2221 = vsub.f32 %v526, %v2220
  %2222 = vmatmul.mubr.f32.gmra.mxu0 %v2221
  %v2223 = vpop.f32.mrf.mxu0
  %v2224 = vadd.f32 %v2043, %v2223
  %v2225 = vpop.f32.mrf.mxu0
  %2226 = vmatprep.mubr.f32.mxu0 0.0
  %v2227 = vand.u32 %v529, 4294901760
  %v2228 = vsub.f32 %v529, %v2227
  %2229 = vmatmul.mubr.f32.gmra.mxu0 %v2228
  %v2230 = vpop.f32.mrf.mxu0
  %v2231 = vadd.f32 %v2049, %v2230
  %v2232 = vpop.f32.mrf.mxu0
  %2233 = vmatprep.mubr.f32.mxu0 0.0
  %v2234 = vand.u32 %v532, 4294901760
  %v2235 = vsub.f32 %v532, %v2234
  %2236 = vmatmul.mubr.f32.gmra.mxu0 %v2235
  %v2237 = vpop.f32.mrf.mxu0
  %v2238 = vadd.f32 %v2055, %v2237
  %v2239 = vpop.f32.mrf.mxu0
  %2240 = vdwg.mxu0
  %2241 = vmatprep.subr.mxu0 0.0
  %2242 = vmatpush1.msra.mxu0 0.0
  %2243 = vmatprep.subr.mxu0 0.0
  %2244 = vmatpush1.msra.mxu0 0.0
  %2245 = vmatprep.subr.mxu0 0.0
  %2246 = vmatpush1.msra.mxu0 0.0
  %2247 = vmatprep.subr.mxu0 0.0
  %2248 = vmatpush1.msra.mxu0 0.0
  %2249 = vmatprep.subr.mxu0 0.0
  %2250 = vmatpush1.msra.mxu0 0.0
  %2251 = vmatprep.subr.mxu0 0.0
  %2252 = vmatpush1.msra.mxu0 0.0
  %2253 = vmatprep.subr.mxu0 0.0
  %2254 = vmatpush1.msra.mxu0 0.0
  %2255 = vmatprep.subr.mxu0 0.0
  %2256 = vmatpush1.msra.mxu0 0.0
  %2257 = vmatprep.subr.mxu0 0.0
  %2258 = vmatpush1.msra.mxu0 0.0
  %2259 = vmatprep.subr.mxu0 0.0
  %2260 = vmatpush1.msra.mxu0 0.0
  %2261 = vmatprep.subr.mxu0 0.0
  %2262 = vmatpush1.msra.mxu0 0.0
  %2263 = vmatprep.subr.mxu0 0.0
  %2264 = vmatpush1.msra.mxu0 0.0
  %2265 = vmatprep.subr.mxu0 0.0
  %2266 = vmatpush1.msra.mxu0 0.0
  %2267 = vmatprep.subr.mxu0 0.0
  %v2268 = vand.u32 %v1653, 4294901760
  %2269 = vmatpush1.msra.mxu0 %v2268
  %2270 = vmatprep.subr.mxu0 0.0
  %v2271 = vand.u32 %v1652, 4294901760
  %2272 = vmatpush1.msra.mxu0 %v2271
  %2273 = vmatprep.subr.mxu0 0.0
  %v2274 = vand.u32 %v1651, 4294901760
  %2275 = vmatpush1.msra.mxu0 %v2274
  %2276 = vmatprep.subr.mxu0 0.0
  %2277 = vmatpush2.msra.mxu0 0.0
  %2278 = vmatprep.subr.mxu0 0.0
  %2279 = vmatpush2.msra.mxu0 0.0
  %2280 = vmatprep.subr.mxu0 0.0
  %2281 = vmatpush2.msra.mxu0 0.0
  %2282 = vmatprep.subr.mxu0 0.0
  %2283 = vmatpush2.msra.mxu0 0.0
  %2284 = vmatprep.subr.mxu0 0.0
  %2285 = vmatpush2.msra.mxu0 0.0
  %2286 = vmatprep.subr.mxu0 0.0
  %2287 = vmatpush2.msra.mxu0 0.0
  %2288 = vmatprep.subr.mxu0 0.0
  %2289 = vmatpush2.msra.mxu0 0.0
  %2290 = vmatprep.subr.mxu0 0.0
  %2291 = vmatpush2.msra.mxu0 0.0
  %2292 = vmatprep.subr.mxu0 0.0
  %2293 = vmatpush2.msra.mxu0 0.0
  %2294 = vmatprep.subr.mxu0 0.0
  %2295 = vmatpush2.msra.mxu0 0.0
  %2296 = vmatprep.subr.mxu0 0.0
  %2297 = vmatpush2.msra.mxu0 0.0
  %2298 = vmatprep.subr.mxu0 0.0
  %2299 = vmatpush2.msra.mxu0 0.0
  %2300 = vmatprep.subr.mxu0 0.0
  %2301 = vmatpush2.msra.mxu0 0.0
  %2302 = vmatprep.subr.mxu0 0.0
  %2303 = vmatpush2.msra.mxu0 0.0
  %2304 = vmatprep.subr.mxu0 0.0
  %2305 = vmatpush2.msra.mxu0 0.0
  %2306 = vmatprep.subr.mxu0 0.0
  %2307 = vmatpush2.msra.mxu0 0.0
  %2308 = vmatprep.mubr.f32.mxu0 0.0
  %v2309 = vand.u32 %v487, 4294901760
  %v2310 = vsub.f32 %v487, %v2309
  %v2311 = vand.u32 %v2310, 4294901760
  %2312 = vmatmul.mubr.f32.gmra.mxu0 %v2311
  %v2313 = vpop.f32.mrf.mxu0
  %v2314 = vadd.f32 %v2133, %v2313
  %v2315 = vpop.f32.mrf.mxu0
  %2316 = vmatprep.mubr.f32.mxu0 0.0
  %v2317 = vand.u32 %v490, 4294901760
  %v2318 = vsub.f32 %v490, %v2317
  %v2319 = vand.u32 %v2318, 4294901760
  %2320 = vmatmul.mubr.f32.gmra.mxu0 %v2319
  %v2321 = vpop.f32.mrf.mxu0
  %v2322 = vadd.f32 %v2140, %v2321
  %v2323 = vpop.f32.mrf.mxu0
  %2324 = vmatprep.mubr.f32.mxu0 0.0
  %v2325 = vand.u32 %v493, 4294901760
  %v2326 = vsub.f32 %v493, %v2325
  %v2327 = vand.u32 %v2326, 4294901760
  %2328 = vmatmul.mubr.f32.gmra.mxu0 %v2327
  %v2329 = vpop.f32.mrf.mxu0
  %v2330 = vadd.f32 %v2147, %v2329
  %v2331 = vpop.f32.mrf.mxu0
  %2332 = vmatprep.mubr.f32.mxu0 0.0
  %v2333 = vand.u32 %v496, 4294901760
  %v2334 = vsub.f32 %v496, %v2333
  %v2335 = vand.u32 %v2334, 4294901760
  %2336 = vmatmul.mubr.f32.gmra.mxu0 %v2335
  %v2337 = vpop.f32.mrf.mxu0
  %v2338 = vadd.f32 %v2154, %v2337
  %v2339 = vpop.f32.mrf.mxu0
  %2340 = vmatprep.mubr.f32.mxu0 0.0
  %v2341 = vand.u32 %v499, 4294901760
  %v2342 = vsub.f32 %v499, %v2341
  %v2343 = vand.u32 %v2342, 4294901760
  %2344 = vmatmul.mubr.f32.gmra.mxu0 %v2343
  %v2345 = vpop.f32.mrf.mxu0
  %v2346 = vadd.f32 %v2161, %v2345
  %v2347 = vpop.f32.mrf.mxu0
  %2348 = vmatprep.mubr.f32.mxu0 0.0
  %v2349 = vand.u32 %v502, 4294901760
  %v2350 = vsub.f32 %v502, %v2349
  %v2351 = vand.u32 %v2350, 4294901760
  %2352 = vmatmul.mubr.f32.gmra.mxu0 %v2351
  %v2353 = vpop.f32.mrf.mxu0
  %v2354 = vadd.f32 %v2168, %v2353
  %v2355 = vpop.f32.mrf.mxu0
  %2356 = vmatprep.mubr.f32.mxu0 0.0
  %v2357 = vand.u32 %v505, 4294901760
  %v2358 = vsub.f32 %v505, %v2357
  %v2359 = vand.u32 %v2358, 4294901760
  %2360 = vmatmul.mubr.f32.gmra.mxu0 %v2359
  %v2361 = vpop.f32.mrf.mxu0
  %v2362 = vadd.f32 %v2175, %v2361
  %v2363 = vpop.f32.mrf.mxu0
  %2364 = vmatprep.mubr.f32.mxu0 0.0
  %v2365 = vand.u32 %v508, 4294901760
  %v2366 = vsub.f32 %v508, %v2365
  %v2367 = vand.u32 %v2366, 4294901760
  %2368 = vmatmul.mubr.f32.gmra.mxu0 %v2367
  %v2369 = vpop.f32.mrf.mxu0
  %v2370 = vadd.f32 %v2182, %v2369
  %v2371 = vpop.f32.mrf.mxu0
  %2372 = vmatprep.mubr.f32.mxu0 0.0
  %v2373 = vand.u32 %v511, 4294901760
  %v2374 = vsub.f32 %v511, %v2373
  %v2375 = vand.u32 %v2374, 4294901760
  %2376 = vmatmul.mubr.f32.gmra.mxu0 %v2375
  %v2377 = vpop.f32.mrf.mxu0
  %v2378 = vadd.f32 %v2189, %v2377
  %v2379 = vpop.f32.mrf.mxu0
  %2380 = vmatprep.mubr.f32.mxu0 0.0
  %v2381 = vand.u32 %v514, 4294901760
  %v2382 = vsub.f32 %v514, %v2381
  %v2383 = vand.u32 %v2382, 4294901760
  %2384 = vmatmul.mubr.f32.gmra.mxu0 %v2383
  %v2385 = vpop.f32.mrf.mxu0
  %v2386 = vadd.f32 %v2196, %v2385
  %v2387 = vpop.f32.mrf.mxu0
  %2388 = vmatprep.mubr.f32.mxu0 0.0
  %v2389 = vand.u32 %v517, 4294901760
  %v2390 = vsub.f32 %v517, %v2389
  %v2391 = vand.u32 %v2390, 4294901760
  %2392 = vmatmul.mubr.f32.gmra.mxu0 %v2391
  %v2393 = vpop.f32.mrf.mxu0
  %v2394 = vadd.f32 %v2203, %v2393
  %v2395 = vpop.f32.mrf.mxu0
  %2396 = vmatprep.mubr.f32.mxu0 0.0
  %v2397 = vand.u32 %v520, 4294901760
  %v2398 = vsub.f32 %v520, %v2397
  %v2399 = vand.u32 %v2398, 4294901760
  %2400 = vmatmul.mubr.f32.gmra.mxu0 %v2399
  %v2401 = vpop.f32.mrf.mxu0
  %v2402 = vadd.f32 %v2210, %v2401
  %v2403 = vpop.f32.mrf.mxu0
  %2404 = vmatprep.mubr.f32.mxu0 0.0
  %v2405 = vand.u32 %v523, 4294901760
  %v2406 = vsub.f32 %v523, %v2405
  %v2407 = vand.u32 %v2406, 4294901760
  %2408 = vmatmul.mubr.f32.gmra.mxu0 %v2407
  %v2409 = vpop.f32.mrf.mxu0
  %v2410 = vadd.f32 %v2217, %v2409
  %v2411 = vpop.f32.mrf.mxu0
  %2412 = vmatprep.mubr.f32.mxu0 0.0
  %v2413 = vand.u32 %v526, 4294901760
  %v2414 = vsub.f32 %v526, %v2413
  %v2415 = vand.u32 %v2414, 4294901760
  %2416 = vmatmul.mubr.f32.gmra.mxu0 %v2415
  %v2417 = vpop.f32.mrf.mxu0
  %v2418 = vadd.f32 %v2224, %v2417
  %v2419 = vpop.f32.mrf.mxu0
  %2420 = vmatprep.mubr.f32.mxu0 0.0
  %v2421 = vand.u32 %v529, 4294901760
  %v2422 = vsub.f32 %v529, %v2421
  %v2423 = vand.u32 %v2422, 4294901760
  %2424 = vmatmul.mubr.f32.gmra.mxu0 %v2423
  %v2425 = vpop.f32.mrf.mxu0
  %v2426 = vadd.f32 %v2231, %v2425
  %v2427 = vpop.f32.mrf.mxu0
  %2428 = vmatprep.mubr.f32.mxu0 0.0
  %v2429 = vand.u32 %v532, 4294901760
  %v2430 = vsub.f32 %v532, %v2429
  %v2431 = vand.u32 %v2430, 4294901760
  %2432 = vmatmul.mubr.f32.gmra.mxu0 %v2431
  %v2433 = vpop.f32.mrf.mxu0
  %v2434 = vadd.f32 %v2238, %v2433
  %v2435 = vpop.f32.mrf.mxu0
  %2436 = vdwg.mxu0
  %2437 = vmatprep.subr.mxu0 0.0
  %2438 = vmatpush1.msra.mxu0 0.0
  %2439 = vmatprep.subr.mxu0 0.0
  %2440 = vmatpush1.msra.mxu0 0.0
  %2441 = vmatprep.subr.mxu0 0.0
  %2442 = vmatpush1.msra.mxu0 0.0
  %2443 = vmatprep.subr.mxu0 0.0
  %2444 = vmatpush1.msra.mxu0 0.0
  %2445 = vmatprep.subr.mxu0 0.0
  %2446 = vmatpush1.msra.mxu0 0.0
  %2447 = vmatprep.subr.mxu0 0.0
  %2448 = vmatpush1.msra.mxu0 0.0
  %2449 = vmatprep.subr.mxu0 0.0
  %2450 = vmatpush1.msra.mxu0 0.0
  %2451 = vmatprep.subr.mxu0 0.0
  %2452 = vmatpush1.msra.mxu0 0.0
  %2453 = vmatprep.subr.mxu0 0.0
  %2454 = vmatpush1.msra.mxu0 0.0
  %2455 = vmatprep.subr.mxu0 0.0
  %2456 = vmatpush1.msra.mxu0 0.0
  %2457 = vmatprep.subr.mxu0 0.0
  %2458 = vmatpush1.msra.mxu0 0.0
  %2459 = vmatprep.subr.mxu0 0.0
  %2460 = vmatpush1.msra.mxu0 0.0
  %2461 = vmatprep.subr.mxu0 0.0
  %2462 = vmatpush1.msra.mxu0 0.0
  %2463 = vmatprep.subr.mxu0 0.0
  %v2464 = vand.u32 %v1653, 4294901760
  %v2465 = vsub.f32 %v1653, %v2464
  %v2466 = vand.u32 %v2465, 4294901760
  %2467 = vmatpush1.msra.mxu0 %v2466
  %2468 = vmatprep.subr.mxu0 0.0
  %v2469 = vand.u32 %v1652, 4294901760
  %v2470 = vsub.f32 %v1652, %v2469
  %v2471 = vand.u32 %v2470, 4294901760
  %2472 = vmatpush1.msra.mxu0 %v2471
  %2473 = vmatprep.subr.mxu0 0.0
  %v2474 = vand.u32 %v1651, 4294901760
  %v2475 = vsub.f32 %v1651, %v2474
  %v2476 = vand.u32 %v2475, 4294901760
  %2477 = vmatpush1.msra.mxu0 %v2476
  %2478 = vmatprep.subr.mxu0 0.0
  %2479 = vmatpush2.msra.mxu0 0.0
  %2480 = vmatprep.subr.mxu0 0.0
  %2481 = vmatpush2.msra.mxu0 0.0
  %2482 = vmatprep.subr.mxu0 0.0
  %2483 = vmatpush2.msra.mxu0 0.0
  %2484 = vmatprep.subr.mxu0 0.0
  %2485 = vmatpush2.msra.mxu0 0.0
  %2486 = vmatprep.subr.mxu0 0.0
  %2487 = vmatpush2.msra.mxu0 0.0
  %2488 = vmatprep.subr.mxu0 0.0
  %2489 = vmatpush2.msra.mxu0 0.0
  %2490 = vmatprep.subr.mxu0 0.0
  %2491 = vmatpush2.msra.mxu0 0.0
  %2492 = vmatprep.subr.mxu0 0.0
  %2493 = vmatpush2.msra.mxu0 0.0
  %2494 = vmatprep.subr.mxu0 0.0
  %2495 = vmatpush2.msra.mxu0 0.0
  %2496 = vmatprep.subr.mxu0 0.0
  %2497 = vmatpush2.msra.mxu0 0.0
  %2498 = vmatprep.subr.mxu0 0.0
  %2499 = vmatpush2.msra.mxu0 0.0
  %2500 = vmatprep.subr.mxu0 0.0
  %2501 = vmatpush2.msra.mxu0 0.0
  %2502 = vmatprep.subr.mxu0 0.0
  %2503 = vmatpush2.msra.mxu0 0.0
  %2504 = vmatprep.subr.mxu0 0.0
  %2505 = vmatpush2.msra.mxu0 0.0
  %2506 = vmatprep.subr.mxu0 0.0
  %2507 = vmatpush2.msra.mxu0 0.0
  %2508 = vmatprep.subr.mxu0 0.0
  %2509 = vmatpush2.msra.mxu0 0.0
  %2510 = vmatprep.mubr.f32.mxu0 0.0
  %v2511 = vand.u32 %v487, 4294901760
  %2512 = vmatmul.mubr.f32.gmra.mxu0 %v2511
  %v2513 = vpop.f32.mrf.mxu0
  %v2514 = vadd.f32 %v2314, %v2513
  %v2515 = vpop.f32.mrf.mxu0
  %2516 = vmatprep.mubr.f32.mxu0 0.0
  %v2517 = vand.u32 %v490, 4294901760
  %2518 = vmatmul.mubr.f32.gmra.mxu0 %v2517
  %v2519 = vpop.f32.mrf.mxu0
  %v2520 = vadd.f32 %v2322, %v2519
  %v2521 = vpop.f32.mrf.mxu0
  %2522 = vmatprep.mubr.f32.mxu0 0.0
  %v2523 = vand.u32 %v493, 4294901760
  %2524 = vmatmul.mubr.f32.gmra.mxu0 %v2523
  %v2525 = vpop.f32.mrf.mxu0
  %v2526 = vadd.f32 %v2330, %v2525
  %v2527 = vpop.f32.mrf.mxu0
  %2528 = vmatprep.mubr.f32.mxu0 0.0
  %v2529 = vand.u32 %v496, 4294901760
  %2530 = vmatmul.mubr.f32.gmra.mxu0 %v2529
  %v2531 = vpop.f32.mrf.mxu0
  %v2532 = vadd.f32 %v2338, %v2531
  %v2533 = vpop.f32.mrf.mxu0
  %2534 = vmatprep.mubr.f32.mxu0 0.0
  %v2535 = vand.u32 %v499, 4294901760
  %2536 = vmatmul.mubr.f32.gmra.mxu0 %v2535
  %v2537 = vpop.f32.mrf.mxu0
  %v2538 = vadd.f32 %v2346, %v2537
  %v2539 = vpop.f32.mrf.mxu0
  %2540 = vmatprep.mubr.f32.mxu0 0.0
  %v2541 = vand.u32 %v502, 4294901760
  %2542 = vmatmul.mubr.f32.gmra.mxu0 %v2541
  %v2543 = vpop.f32.mrf.mxu0
  %v2544 = vadd.f32 %v2354, %v2543
  %v2545 = vpop.f32.mrf.mxu0
  %2546 = vmatprep.mubr.f32.mxu0 0.0
  %v2547 = vand.u32 %v505, 4294901760
  %2548 = vmatmul.mubr.f32.gmra.mxu0 %v2547
  %v2549 = vpop.f32.mrf.mxu0
  %v2550 = vadd.f32 %v2362, %v2549
  %v2551 = vpop.f32.mrf.mxu0
  %2552 = vmatprep.mubr.f32.mxu0 0.0
  %v2553 = vand.u32 %v508, 4294901760
  %2554 = vmatmul.mubr.f32.gmra.mxu0 %v2553
  %v2555 = vpop.f32.mrf.mxu0
  %v2556 = vadd.f32 %v2370, %v2555
  %v2557 = vpop.f32.mrf.mxu0
  %2558 = vmatprep.mubr.f32.mxu0 0.0
  %v2559 = vand.u32 %v511, 4294901760
  %2560 = vmatmul.mubr.f32.gmra.mxu0 %v2559
  %v2561 = vpop.f32.mrf.mxu0
  %v2562 = vadd.f32 %v2378, %v2561
  %v2563 = vpop.f32.mrf.mxu0
  %2564 = vmatprep.mubr.f32.mxu0 0.0
  %v2565 = vand.u32 %v514, 4294901760
  %2566 = vmatmul.mubr.f32.gmra.mxu0 %v2565
  %v2567 = vpop.f32.mrf.mxu0
  %v2568 = vadd.f32 %v2386, %v2567
  %v2569 = vpop.f32.mrf.mxu0
  %2570 = vmatprep.mubr.f32.mxu0 0.0
  %v2571 = vand.u32 %v517, 4294901760
  %2572 = vmatmul.mubr.f32.gmra.mxu0 %v2571
  %v2573 = vpop.f32.mrf.mxu0
  %v2574 = vadd.f32 %v2394, %v2573
  %v2575 = vpop.f32.mrf.mxu0
  %2576 = vmatprep.mubr.f32.mxu0 0.0
  %v2577 = vand.u32 %v520, 4294901760
  %2578 = vmatmul.mubr.f32.gmra.mxu0 %v2577
  %v2579 = vpop.f32.mrf.mxu0
  %v2580 = vadd.f32 %v2402, %v2579
  %v2581 = vpop.f32.mrf.mxu0
  %2582 = vmatprep.mubr.f32.mxu0 0.0
  %v2583 = vand.u32 %v523, 4294901760
  %2584 = vmatmul.mubr.f32.gmra.mxu0 %v2583
  %v2585 = vpop.f32.mrf.mxu0
  %v2586 = vadd.f32 %v2410, %v2585
  %v2587 = vpop.f32.mrf.mxu0
  %2588 = vmatprep.mubr.f32.mxu0 0.0
  %v2589 = vand.u32 %v526, 4294901760
  %2590 = vmatmul.mubr.f32.gmra.mxu0 %v2589
  %v2591 = vpop.f32.mrf.mxu0
  %v2592 = vadd.f32 %v2418, %v2591
  %v2593 = vpop.f32.mrf.mxu0
  %2594 = vmatprep.mubr.f32.mxu0 0.0
  %v2595 = vand.u32 %v529, 4294901760
  %2596 = vmatmul.mubr.f32.gmra.mxu0 %v2595
  %v2597 = vpop.f32.mrf.mxu0
  %v2598 = vadd.f32 %v2426, %v2597
  %v2599 = vpop.f32.mrf.mxu0
  %2600 = vmatprep.mubr.f32.mxu0 0.0
  %v2601 = vand.u32 %v532, 4294901760
  %2602 = vmatmul.mubr.f32.gmra.mxu0 %v2601
  %v2603 = vpop.f32.mrf.mxu0
  %v2604 = vadd.f32 %v2434, %v2603
  %v2605 = vpop.f32.mrf.mxu0
  %2606 = vdwg.mxu0
  %2607 = vmatprep.subr.mxu0 0.0
  %2608 = vmatpush1.msra.mxu0 0.0
  %2609 = vmatprep.subr.mxu0 0.0
  %2610 = vmatpush1.msra.mxu0 0.0
  %2611 = vmatprep.subr.mxu0 0.0
  %2612 = vmatpush1.msra.mxu0 0.0
  %2613 = vmatprep.subr.mxu0 0.0
  %2614 = vmatpush1.msra.mxu0 0.0
  %2615 = vmatprep.subr.mxu0 0.0
  %2616 = vmatpush1.msra.mxu0 0.0
  %2617 = vmatprep.subr.mxu0 0.0
  %2618 = vmatpush1.msra.mxu0 0.0
  %2619 = vmatprep.subr.mxu0 0.0
  %2620 = vmatpush1.msra.mxu0 0.0
  %2621 = vmatprep.subr.mxu0 0.0
  %2622 = vmatpush1.msra.mxu0 0.0
  %2623 = vmatprep.subr.mxu0 0.0
  %2624 = vmatpush1.msra.mxu0 0.0
  %2625 = vmatprep.subr.mxu0 0.0
  %2626 = vmatpush1.msra.mxu0 0.0
  %2627 = vmatprep.subr.mxu0 0.0
  %2628 = vmatpush1.msra.mxu0 0.0
  %2629 = vmatprep.subr.mxu0 0.0
  %2630 = vmatpush1.msra.mxu0 0.0
  %2631 = vmatprep.subr.mxu0 0.0
  %2632 = vmatpush1.msra.mxu0 0.0
  %2633 = vmatprep.subr.mxu0 0.0
  %v2634 = vand.u32 %v1653, 4294901760
  %2635 = vmatpush1.msra.mxu0 %v2634
  %2636 = vmatprep.subr.mxu0 0.0
  %v2637 = vand.u32 %v1652, 4294901760
  %2638 = vmatpush1.msra.mxu0 %v2637
  %2639 = vmatprep.subr.mxu0 0.0
  %v2640 = vand.u32 %v1651, 4294901760
  %2641 = vmatpush1.msra.mxu0 %v2640
  %2642 = vmatprep.subr.mxu0 0.0
  %2643 = vmatpush2.msra.mxu0 0.0
  %2644 = vmatprep.subr.mxu0 0.0
  %2645 = vmatpush2.msra.mxu0 0.0
  %2646 = vmatprep.subr.mxu0 0.0
  %2647 = vmatpush2.msra.mxu0 0.0
  %2648 = vmatprep.subr.mxu0 0.0
  %2649 = vmatpush2.msra.mxu0 0.0
  %2650 = vmatprep.subr.mxu0 0.0
  %2651 = vmatpush2.msra.mxu0 0.0
  %2652 = vmatprep.subr.mxu0 0.0
  %2653 = vmatpush2.msra.mxu0 0.0
  %2654 = vmatprep.subr.mxu0 0.0
  %2655 = vmatpush2.msra.mxu0 0.0
  %2656 = vmatprep.subr.mxu0 0.0
  %2657 = vmatpush2.msra.mxu0 0.0
  %2658 = vmatprep.subr.mxu0 0.0
  %2659 = vmatpush2.msra.mxu0 0.0
  %2660 = vmatprep.subr.mxu0 0.0
  %2661 = vmatpush2.msra.mxu0 0.0
  %2662 = vmatprep.subr.mxu0 0.0
  %2663 = vmatpush2.msra.mxu0 0.0
  %2664 = vmatprep.subr.mxu0 0.0
  %2665 = vmatpush2.msra.mxu0 0.0
  %2666 = vmatprep.subr.mxu0 0.0
  %2667 = vmatpush2.msra.mxu0 0.0
  %2668 = vmatprep.subr.mxu0 0.0
  %2669 = vmatpush2.msra.mxu0 0.0
  %2670 = vmatprep.subr.mxu0 0.0
  %2671 = vmatpush2.msra.mxu0 0.0
  %2672 = vmatprep.subr.mxu0 0.0
  %2673 = vmatpush2.msra.mxu0 0.0
  %2674 = vmatprep.mubr.f32.mxu0 0.0
  %v2675 = vand.u32 %v487, 4294901760
  %2676 = vmatmul.mubr.f32.gmra.mxu0 %v2675
  %v2677 = vpop.f32.mrf.mxu0
  %v2678 = vadd.f32 %v2514, %v2677
  %v2679 = vpop.f32.mrf.mxu0
  %2680 = vmatprep.mubr.f32.mxu0 0.0
  %v2681 = vand.u32 %v490, 4294901760
  %2682 = vmatmul.mubr.f32.gmra.mxu0 %v2681
  %v2683 = vpop.f32.mrf.mxu0
  %v2684 = vadd.f32 %v2520, %v2683
  %v2685 = vpop.f32.mrf.mxu0
  %2686 = vmatprep.mubr.f32.mxu0 0.0
  %v2687 = vand.u32 %v493, 4294901760
  %2688 = vmatmul.mubr.f32.gmra.mxu0 %v2687
  %v2689 = vpop.f32.mrf.mxu0
  %v2690 = vadd.f32 %v2526, %v2689
  %v2691 = vpop.f32.mrf.mxu0
  %2692 = vmatprep.mubr.f32.mxu0 0.0
  %v2693 = vand.u32 %v496, 4294901760
  %2694 = vmatmul.mubr.f32.gmra.mxu0 %v2693
  %v2695 = vpop.f32.mrf.mxu0
  %v2696 = vadd.f32 %v2532, %v2695
  %v2697 = vpop.f32.mrf.mxu0
  %2698 = vmatprep.mubr.f32.mxu0 0.0
  %v2699 = vand.u32 %v499, 4294901760
  %2700 = vmatmul.mubr.f32.gmra.mxu0 %v2699
  %v2701 = vpop.f32.mrf.mxu0
  %v2702 = vadd.f32 %v2538, %v2701
  %v2703 = vpop.f32.mrf.mxu0
  %2704 = vmatprep.mubr.f32.mxu0 0.0
  %v2705 = vand.u32 %v502, 4294901760
  %2706 = vmatmul.mubr.f32.gmra.mxu0 %v2705
  %v2707 = vpop.f32.mrf.mxu0
  %v2708 = vadd.f32 %v2544, %v2707
  %v2709 = vpop.f32.mrf.mxu0
  %2710 = vmatprep.mubr.f32.mxu0 0.0
  %v2711 = vand.u32 %v505, 4294901760
  %2712 = vmatmul.mubr.f32.gmra.mxu0 %v2711
  %v2713 = vpop.f32.mrf.mxu0
  %v2714 = vadd.f32 %v2550, %v2713
  %v2715 = vpop.f32.mrf.mxu0
  %2716 = vmatprep.mubr.f32.mxu0 0.0
  %v2717 = vand.u32 %v508, 4294901760
  %2718 = vmatmul.mubr.f32.gmra.mxu0 %v2717
  %v2719 = vpop.f32.mrf.mxu0
  %v2720 = vadd.f32 %v2556, %v2719
  %v2721 = vpop.f32.mrf.mxu0
  %2722 = vmatprep.mubr.f32.mxu0 0.0
  %v2723 = vand.u32 %v511, 4294901760
  %2724 = vmatmul.mubr.f32.gmra.mxu0 %v2723
  %v2725 = vpop.f32.mrf.mxu0
  %v2726 = vadd.f32 %v2562, %v2725
  %v2727 = vpop.f32.mrf.mxu0
  %2728 = vmatprep.mubr.f32.mxu0 0.0
  %v2729 = vand.u32 %v514, 4294901760
  %2730 = vmatmul.mubr.f32.gmra.mxu0 %v2729
  %v2731 = vpop.f32.mrf.mxu0
  %v2732 = vadd.f32 %v2568, %v2731
  %v2733 = vpop.f32.mrf.mxu0
  %2734 = vmatprep.mubr.f32.mxu0 0.0
  %v2735 = vand.u32 %v517, 4294901760
  %2736 = vmatmul.mubr.f32.gmra.mxu0 %v2735
  %v2737 = vpop.f32.mrf.mxu0
  %v2738 = vadd.f32 %v2574, %v2737
  %v2739 = vpop.f32.mrf.mxu0
  %2740 = vmatprep.mubr.f32.mxu0 0.0
  %v2741 = vand.u32 %v520, 4294901760
  %2742 = vmatmul.mubr.f32.gmra.mxu0 %v2741
  %v2743 = vpop.f32.mrf.mxu0
  %v2744 = vadd.f32 %v2580, %v2743
  %v2745 = vpop.f32.mrf.mxu0
  %2746 = vmatprep.mubr.f32.mxu0 0.0
  %v2747 = vand.u32 %v523, 4294901760
  %2748 = vmatmul.mubr.f32.gmra.mxu0 %v2747
  %v2749 = vpop.f32.mrf.mxu0
  %v2750 = vadd.f32 %v2586, %v2749
  %v2751 = vpop.f32.mrf.mxu0
  %2752 = vmatprep.mubr.f32.mxu0 0.0
  %v2753 = vand.u32 %v526, 4294901760
  %2754 = vmatmul.mubr.f32.gmra.mxu0 %v2753
  %v2755 = vpop.f32.mrf.mxu0
  %v2756 = vadd.f32 %v2592, %v2755
  %v2757 = vpop.f32.mrf.mxu0
  %2758 = vmatprep.mubr.f32.mxu0 0.0
  %v2759 = vand.u32 %v529, 4294901760
  %2760 = vmatmul.mubr.f32.gmra.mxu0 %v2759
  %v2761 = vpop.f32.mrf.mxu0
  %v2762 = vadd.f32 %v2598, %v2761
  %v2763 = vpop.f32.mrf.mxu0
  %2764 = vmatprep.mubr.f32.mxu0 0.0
  %v2765 = vand.u32 %v532, 4294901760
  %2766 = vmatmul.mubr.f32.gmra.mxu0 %v2765
  %v2767 = vpop.f32.mrf.mxu0
  %v2768 = vadd.f32 %v2604, %v2767
  %v2769 = vpop.f32.mrf.mxu0
  %2770 = vdwg.mxu0
  %vm2771 = vcmp.lt.s32.totalorder %v36, 16
  %v2772 = vsel %vm2771, 1, 0
  %v2773 = vcvt.s32.f32 %v2772
  %vm2774 = vcmp.eq.s32.totalorder %v36, 16
  %v2775 = vsel %vm2774, 1, 0
  %v2776 = vcvt.s32.f32 %v2775
  %v2777 = vmul.f32 %v1558, %v1558
  %v2778 = vmul.f32 %v1564, %v1564
  %v2779 = vmul.f32 %v1570, %v1570
  %v2780 = vmul.f32 %v1576, %v1576
  %v2781 = vmul.f32 %v1582, %v1582
  %v2782 = vmul.f32 %v1588, %v1588
  %v2783 = vmul.f32 %v1594, %v1594
  %v2784 = vmul.f32 %v1600, %v1600
  %v2785 = vmul.f32 %v1606, %v1606
  %v2786 = vmul.f32 %v1612, %v1612
  %v2787 = vmul.f32 %v1618, %v1618
  %v2788 = vmul.f32 %v1624, %v1624
  %v2789 = vmul.f32 %v1630, %v1630
  %v2790 = vmul.f32 %v1636, %v1636
  %v2791 = vmul.f32 %v1642, %v1642
  %v2792 = vmul.f32 %v1648, %v1648
  %v2793 = vsub.f32 %v2777, %v2678
  %v2794 = vsub.f32 %v2778, %v2684
  %v2795 = vsub.f32 %v2779, %v2690
  %v2796 = vsub.f32 %v2780, %v2696
  %v2797 = vsub.f32 %v2781, %v2702
  %v2798 = vsub.f32 %v2782, %v2708
  %v2799 = vsub.f32 %v2783, %v2714
  %v2800 = vsub.f32 %v2784, %v2720
  %v2801 = vsub.f32 %v2785, %v2726
  %v2802 = vsub.f32 %v2786, %v2732
  %v2803 = vsub.f32 %v2787, %v2738
  %v2804 = vsub.f32 %v2788, %v2744
  %v2805 = vsub.f32 %v2789, %v2750
  %v2806 = vsub.f32 %v2790, %v2756
  %v2807 = vsub.f32 %v2791, %v2762
  %v2808 = vsub.f32 %v2792, %v2768
  %v2809 = vmul.f32 %v2793, 0.5
  %v2810 = vmul.f32 %v2794, 0.5
  %v2811 = vmul.f32 %v2795, 0.5
  %v2812 = vmul.f32 %v2796, 0.5
  %v2813 = vmul.f32 %v2797, 0.5
  %v2814 = vmul.f32 %v2798, 0.5
  %v2815 = vmul.f32 %v2799, 0.5
  %v2816 = vmul.f32 %v2800, 0.5
  %v2817 = vmul.f32 %v2801, 0.5
  %v2818 = vmul.f32 %v2802, 0.5
  %v2819 = vmul.f32 %v2803, 0.5
  %v2820 = vmul.f32 %v2804, 0.5
  %v2821 = vmul.f32 %v2805, 0.5
  %v2822 = vmul.f32 %v2806, 0.5
  %v2823 = vmul.f32 %v2807, 0.5
  %v2824 = vmul.f32 %v2808, 0.5
  %v2825 = vmul.f32 %v2809, %v2773
  %v2826 = vmul.f32 %v2810, %v2773
  %v2827 = vmul.f32 %v2811, %v2773
  %v2828 = vmul.f32 %v2812, %v2773
  %v2829 = vmul.f32 %v2813, %v2773
  %v2830 = vmul.f32 %v2814, %v2773
  %v2831 = vmul.f32 %v2815, %v2773
  %v2832 = vmul.f32 %v2816, %v2773
  %v2833 = vmul.f32 %v2817, %v2773
  %v2834 = vmul.f32 %v2818, %v2773
  %v2835 = vmul.f32 %v2819, %v2773
  %v2836 = vmul.f32 %v2820, %v2773
  %v2837 = vmul.f32 %v2821, %v2773
  %v2838 = vmul.f32 %v2822, %v2773
  %v2839 = vmul.f32 %v2823, %v2773
  %v2840 = vmul.f32 %v2824, %v2773
  %v2841 = vmul.f32 %v1558, %v2776
  %v2842 = vmul.f32 %v1564, %v2776
  %v2843 = vmul.f32 %v1570, %v2776
  %v2844 = vmul.f32 %v1576, %v2776
  %v2845 = vmul.f32 %v1582, %v2776
  %v2846 = vmul.f32 %v1588, %v2776
  %v2847 = vmul.f32 %v1594, %v2776
  %v2848 = vmul.f32 %v1600, %v2776
  %v2849 = vmul.f32 %v1606, %v2776
  %v2850 = vmul.f32 %v1612, %v2776
  %v2851 = vmul.f32 %v1618, %v2776
  %v2852 = vmul.f32 %v1624, %v2776
  %v2853 = vmul.f32 %v1630, %v2776
  %v2854 = vmul.f32 %v1636, %v2776
  %v2855 = vmul.f32 %v1642, %v2776
  %v2856 = vmul.f32 %v1648, %v2776
  %v2857 = vadd.f32 %v2825, %v2841
  %v2858 = vadd.f32 %v2826, %v2842
  %v2859 = vadd.f32 %v2827, %v2843
  %v2860 = vadd.f32 %v2828, %v2844
  %v2861 = vadd.f32 %v2829, %v2845
  %v2862 = vadd.f32 %v2830, %v2846
  %v2863 = vadd.f32 %v2831, %v2847
  %v2864 = vadd.f32 %v2832, %v2848
  %v2865 = vadd.f32 %v2833, %v2849
  %v2866 = vadd.f32 %v2834, %v2850
  %v2867 = vadd.f32 %v2835, %v2851
  %v2868 = vadd.f32 %v2836, %v2852
  %v2869 = vadd.f32 %v2837, %v2853
  %v2870 = vadd.f32 %v2838, %v2854
  %v2871 = vadd.f32 %v2839, %v2855
  %v2872 = vadd.f32 %v2840, %v2856
  %vm2873 = vcmask 138240
  %v2874 = vsel %vm2873, %v2857, 0.0
  %2875 = vadd.xlane.f32.xlu0 %v2874
  %v2876 = vpop.xlane.xlu0 %2875
  %v2877 = vsel %vm2873, %v2858, 0.0
  %2878 = vadd.xlane.f32.xlu0 %v2877
  %v2879 = vpop.xlane.xlu0 %2878
  %v2880 = vsel %vm2873, %v2859, 0.0
  %2881 = vadd.xlane.f32.xlu0 %v2880
  %v2882 = vpop.xlane.xlu0 %2881
  %v2883 = vsel %vm2873, %v2860, 0.0
  %2884 = vadd.xlane.f32.xlu0 %v2883
  %v2885 = vpop.xlane.xlu0 %2884
  %v2886 = vsel %vm2873, %v2861, 0.0
  %2887 = vadd.xlane.f32.xlu0 %v2886
  %v2888 = vpop.xlane.xlu0 %2887
  %v2889 = vsel %vm2873, %v2862, 0.0
  %2890 = vadd.xlane.f32.xlu0 %v2889
  %v2891 = vpop.xlane.xlu0 %2890
  %v2892 = vsel %vm2873, %v2863, 0.0
  %2893 = vadd.xlane.f32.xlu0 %v2892
  %v2894 = vpop.xlane.xlu0 %2893
  %v2895 = vsel %vm2873, %v2864, 0.0
  %2896 = vadd.xlane.f32.xlu0 %v2895
  %v2897 = vpop.xlane.xlu0 %2896
  %v2898 = vsel %vm2873, %v2865, 0.0
  %2899 = vadd.xlane.f32.xlu0 %v2898
  %v2900 = vpop.xlane.xlu0 %2899
  %v2901 = vsel %vm2873, %v2866, 0.0
  %2902 = vadd.xlane.f32.xlu0 %v2901
  %v2903 = vpop.xlane.xlu0 %2902
  %v2904 = vsel %vm2873, %v2867, 0.0
  %2905 = vadd.xlane.f32.xlu0 %v2904
  %v2906 = vpop.xlane.xlu0 %2905
  %v2907 = vsel %vm2873, %v2868, 0.0
  %2908 = vadd.xlane.f32.xlu0 %v2907
  %v2909 = vpop.xlane.xlu0 %2908
  %v2910 = vsel %vm2873, %v2869, 0.0
  %2911 = vadd.xlane.f32.xlu0 %v2910
  %v2912 = vpop.xlane.xlu0 %2911
  %v2913 = vsel %vm2873, %v2870, 0.0
  %2914 = vadd.xlane.f32.xlu0 %v2913
  %v2915 = vpop.xlane.xlu0 %2914
  %v2916 = vsel %vm2873, %v2871, 0.0
  %2917 = vadd.xlane.f32.xlu0 %v2916
  %v2918 = vpop.xlane.xlu0 %2917
  %v2919 = vsel %vm2873, %v2872, 0.0
  %2920 = vadd.xlane.f32.xlu0 %v2919
  %v2921 = vpop.xlane.xlu0 %2920
  %v2922 = vstv %s34
  %v2923 = vadd.f32 %v2876, %v2922
  %v2924 = vadd.f32 %v2879, %v2922
  %v2925 = vadd.f32 %v2882, %v2922
  %v2926 = vadd.f32 %v2885, %v2922
  %v2927 = vadd.f32 %v2888, %v2922
  %v2928 = vadd.f32 %v2891, %v2922
  %v2929 = vadd.f32 %v2894, %v2922
  %v2930 = vadd.f32 %v2897, %v2922
  %v2931 = vadd.f32 %v2900, %v2922
  %v2932 = vadd.f32 %v2903, %v2922
  %v2933 = vadd.f32 %v2906, %v2922
  %v2934 = vadd.f32 %v2909, %v2922
  %v2935 = vadd.f32 %v2912, %v2922
  %v2936 = vadd.f32 %v2915, %v2922
  %v2937 = vadd.f32 %v2918, %v2922
  %v2938 = vadd.f32 %v2921, %v2922
  %v2939 = vxor.u32 %v2923, 2147483648
  %v2940 = vxor.u32 %v2924, 2147483648
  %v2941 = vxor.u32 %v2925, 2147483648
  %v2942 = vxor.u32 %v2926, 2147483648
  %v2943 = vxor.u32 %v2927, 2147483648
  %v2944 = vxor.u32 %v2928, 2147483648
  %v2945 = vxor.u32 %v2929, 2147483648
  %v2946 = vxor.u32 %v2930, 2147483648
  %v2947 = vxor.u32 %v2931, 2147483648
  %v2948 = vxor.u32 %v2932, 2147483648
  %v2949 = vxor.u32 %v2933, 2147483648
  %v2950 = vxor.u32 %v2934, 2147483648
  %v2951 = vxor.u32 %v2935, 2147483648
  %v2952 = vxor.u32 %v2936, 2147483648
  %v2953 = vxor.u32 %v2937, 2147483648
  %v2954 = vxor.u32 %v2938, 2147483648
  %v2955 = vmul.f32 %v2939, 1.442695
  %v2956 = vpow.pop %v2955
  %v2957 = vmul.f32 %v2940, 1.442695
  %v2958 = vpow.pop %v2957
  %v2959 = vmul.f32 %v2941, 1.442695
  %v2960 = vpow.pop %v2959
  %v2961 = vmul.f32 %v2942, 1.442695
  %v2962 = vpow.pop %v2961
  %v2963 = vmul.f32 %v2943, 1.442695
  %v2964 = vpow.pop %v2963
  %v2965 = vmul.f32 %v2944, 1.442695
  %v2966 = vpow.pop %v2965
  %v2967 = vmul.f32 %v2945, 1.442695
  %v2968 = vpow.pop %v2967
  %v2969 = vmul.f32 %v2946, 1.442695
  %v2970 = vpow.pop %v2969
  %v2971 = vmul.f32 %v2947, 1.442695
  %v2972 = vpow.pop %v2971
  %v2973 = vmul.f32 %v2948, 1.442695
  %v2974 = vpow.pop %v2973
  %v2975 = vmul.f32 %v2949, 1.442695
  %v2976 = vpow.pop %v2975
  %v2977 = vmul.f32 %v2950, 1.442695
  %v2978 = vpow.pop %v2977
  %v2979 = vmul.f32 %v2951, 1.442695
  %v2980 = vpow.pop %v2979
  %v2981 = vmul.f32 %v2952, 1.442695
  %v2982 = vpow.pop %v2981
  %v2983 = vmul.f32 %v2953, 1.442695
  %v2984 = vpow.pop %v2983
  %v2985 = vmul.f32 %v2954, 1.442695
  %v2986 = vpow.pop %v2985
  %v2987 = vadd.f32 %v2956, 1.0
  %v2988 = vadd.f32 %v2958, 1.0
  %v2989 = vadd.f32 %v2960, 1.0
  %v2990 = vadd.f32 %v2962, 1.0
  %v2991 = vadd.f32 %v2964, 1.0
  %v2992 = vadd.f32 %v2966, 1.0
  %v2993 = vadd.f32 %v2968, 1.0
  %v2994 = vadd.f32 %v2970, 1.0
  %v2995 = vadd.f32 %v2972, 1.0
  %v2996 = vadd.f32 %v2974, 1.0
  %v2997 = vadd.f32 %v2976, 1.0
  %v2998 = vadd.f32 %v2978, 1.0
  %v2999 = vadd.f32 %v2980, 1.0
  %v3000 = vadd.f32 %v2982, 1.0
  %v3001 = vadd.f32 %v2984, 1.0
  %v3002 = vadd.f32 %v2986, 1.0
  %v3003 = vrcp.pop %v2987
  %v3004 = vmul.f32 1.0, %v3003
  %v3005 = vrcp.pop %v2988
  %v3006 = vmul.f32 1.0, %v3005
  %v3007 = vrcp.pop %v2989
  %v3008 = vmul.f32 1.0, %v3007
  %v3009 = vrcp.pop %v2990
  %v3010 = vmul.f32 1.0, %v3009
  %v3011 = vrcp.pop %v2991
  %v3012 = vmul.f32 1.0, %v3011
  %v3013 = vrcp.pop %v2992
  %v3014 = vmul.f32 1.0, %v3013
  %v3015 = vrcp.pop %v2993
  %v3016 = vmul.f32 1.0, %v3015
  %v3017 = vrcp.pop %v2994
  %v3018 = vmul.f32 1.0, %v3017
  %v3019 = vrcp.pop %v2995
  %v3020 = vmul.f32 1.0, %v3019
  %v3021 = vrcp.pop %v2996
  %v3022 = vmul.f32 1.0, %v3021
  %v3023 = vrcp.pop %v2997
  %v3024 = vmul.f32 1.0, %v3023
  %v3025 = vrcp.pop %v2998
  %v3026 = vmul.f32 1.0, %v3025
  %v3027 = vrcp.pop %v2999
  %v3028 = vmul.f32 1.0, %v3027
  %v3029 = vrcp.pop %v3000
  %v3030 = vmul.f32 1.0, %v3029
  %v3031 = vrcp.pop %v3001
  %v3032 = vmul.f32 1.0, %v3031
  %v3033 = vrcp.pop %v3002
  %v3034 = vmul.f32 1.0, %v3033
  %vm3035 = vcmask 7168
  %3036 = vst.msk [vmem:[%s3] sm:$0xff] %vm3035, %v3004
  %3037 = vst.msk [vmem:[%s3 + $0x8] sm:$0xff] %vm3035, %v3006
  %3038 = vst.msk [vmem:[%s3 + $0x10] sm:$0xff] %vm3035, %v3008
  %3039 = vst.msk [vmem:[%s3 + $0x18] sm:$0xff] %vm3035, %v3010
  %3040 = vst.msk [vmem:[%s3 + $0x20] sm:$0xff] %vm3035, %v3012
  %3041 = vst.msk [vmem:[%s3 + $0x28] sm:$0xff] %vm3035, %v3014
  %3042 = vst.msk [vmem:[%s3 + $0x30] sm:$0xff] %vm3035, %v3016
  %3043 = vst.msk [vmem:[%s3 + $0x38] sm:$0xff] %vm3035, %v3018
  %3044 = vst.msk [vmem:[%s3 + $0x40] sm:$0xff] %vm3035, %v3020
  %3045 = vst.msk [vmem:[%s3 + $0x48] sm:$0xff] %vm3035, %v3022
  %3046 = vst.msk [vmem:[%s3 + $0x50] sm:$0xff] %vm3035, %v3024
  %3047 = vst.msk [vmem:[%s3 + $0x58] sm:$0xff] %vm3035, %v3026
  %3048 = vst.msk [vmem:[%s3 + $0x60] sm:$0xff] %vm3035, %v3028
  %3049 = vst.msk [vmem:[%s3 + $0x68] sm:$0xff] %vm3035, %v3030
  %3050 = vst.msk [vmem:[%s3 + $0x70] sm:$0xff] %vm3035, %v3032
  %3051 = vst.msk [vmem:[%s3 + $0x78] sm:$0xff] %vm3035, %v3034
  // Predicated region
  $region14: #{tpu_custom_call.1} parent=0 // pred_check
    _
  $region15: #{tpu_custom_call.1} parent=0 // pred_check_branch
    %3053 = sbr.rel (0) target = $region17
  $region16: #{tpu_custom_call.1} parent=0 // pred_region
    _
  $region17: #{tpu_custom_call.1} parent=0 // pred_fallthru
    _
  // Predicated region
  $region18: #{tpu_custom_call.1} parent=0 // pred_check
    _
  $region19: #{tpu_custom_call.1} parent=0 // pred_check_branch
    %3055 = sbr.rel (0) target = $region21
  $region20: #{tpu_custom_call.1} parent=0 // pred_region
    _
  $region21: #{tpu_custom_call.1} parent=0 // pred_fallthru
    _

</llo_original>
